<compile_context>
chip_gen: v6e
topology: v6e:2x2x1
jax: 0.10.0
libtpu: 0.0.40
codegen_flags: <defaults>
</compile_context>

<pallas_src>
import functools

import jax
import jax.numpy as jnp
from jax import lax
from jax.experimental import pallas as pl
from jax.experimental.pallas import tpu as pltpu


def mha_prenorm_kernel(x_ref, gamma_ref, beta_ref,
                       wq_ref, wk_ref, wv_ref,
                       bq_ref, bk_ref, bv_ref,
                       wo_ref, bo_ref,
                       out_ref, *, num_heads, scale, ln_eps):
    # x_ref block is (N, C): tokens on sublanes, channels on lanes.
    x = x_ref[...].astype(jnp.float32)
    n_tok, dim = x.shape
    head_dim = dim // num_heads

    # ---- pre-LayerNorm over the channel (lane) axis -----------------------
    mean = jnp.mean(x, axis=-1, keepdims=True)
    xc = x - mean
    var = jnp.mean(xc * xc, axis=-1, keepdims=True)
    xn = xc * lax.rsqrt(var + ln_eps)                       # EUP rsqrt
    xn = xn * gamma_ref[...].astype(jnp.float32) \
            + beta_ref[...].astype(jnp.float32)

    # ---- fused QKV projections (MXU, f32 accumulation) --------------------
    q = jnp.dot(xn, wq_ref[...], preferred_element_type=jnp.float32) + bq_ref[...]
    k = jnp.dot(xn, wk_ref[...], preferred_element_type=jnp.float32) + bk_ref[...]
    v = jnp.dot(xn, wv_ref[...], preferred_element_type=jnp.float32) + bv_ref[...]

    # ---- per-head attention (static unroll over heads) --------------------
    head_outs = []
    for h in range(num_heads):
        lo = h * head_dim
        hi = lo + head_dim
        qh = q[:, lo:hi]                                    # (N, hd)
        kh = k[:, lo:hi]
        vh = v[:, lo:hi]
        # q @ k^T without an explicit transpose: contract the last dims.
        s = lax.dot_general(qh, kh, (((1,), (1,)), ((), ())),
                            preferred_element_type=jnp.float32) * scale
        s = s - jnp.max(s, axis=-1, keepdims=True)          # stable softmax
        p = jnp.exp(s)
        p = p * pl.reciprocal(jnp.sum(p, axis=-1, keepdims=True), approx=False)
        head_outs.append(
            jnp.dot(p, vh, preferred_element_type=jnp.float32))
    attn_out = jnp.concatenate(head_outs, axis=-1)          # (N, C)

    # ---- output projection + residual --------------------------------------
    y = jnp.dot(attn_out, wo_ref[...], preferred_element_type=jnp.float32) \
        + bo_ref[...]
    out_ref[...] = (x + y).astype(out_ref.dtype)


def multihead_attention_with_prenorm(x, params, *, num_heads, ln_eps=1e-5):
    """Forward pass of MultiheadAttentionWithPreNorm.  x: (B, N, C)."""
    B, N, C = x.shape
    head_dim = C // num_heads
    scale = head_dim ** (-0.5)

    # Re-layout PyTorch parameters for right-multiplication inside the kernel.
    gamma = params["ln_weight"].reshape(1, C)
    beta = params["ln_bias"].reshape(1, C)
    w_qkv = params["qkv_weight"]          # (3C, C), torch Linear layout
    b_qkv = params["qkv_bias"]            # (3C,)
    wq = w_qkv[:C].T                      # (C, C)
    wk = w_qkv[C:2 * C].T
    wv = w_qkv[2 * C:].T
    bq = b_qkv[:C].reshape(1, C)
    bk = b_qkv[C:2 * C].reshape(1, C)
    bv = b_qkv[2 * C:].reshape(1, C)
    wo = params["proj_weight"].T          # (C, C)
    bo = params["proj_bias"].reshape(1, C)

    kernel = functools.partial(mha_prenorm_kernel, num_heads=num_heads,
                               scale=scale, ln_eps=ln_eps)

    # Per-batch block of x / out; weights are full-extent (resident in VMEM).
    x_spec = pl.BlockSpec((None, N, C), lambda b: (b, 0, 0))

    def full_spec(shape):
        return pl.BlockSpec(shape, lambda b, _s=shape: tuple(0 for _ in _s))

    return pl.pallas_call(
        kernel,
        out_shape=jax.ShapeDtypeStruct((B, N, C), x.dtype),
        grid=(B,),
        in_specs=[
            x_spec,
            full_spec((1, C)), full_spec((1, C)),             # gamma, beta
            full_spec((C, C)), full_spec((C, C)), full_spec((C, C)),  # Wq,Wk,Wv
            full_spec((1, C)), full_spec((1, C)), full_spec((1, C)),  # bq,bk,bv
            full_spec((C, C)), full_spec((1, C)),             # Wo, bo
        ],
        out_specs=x_spec,
        compiler_params=pltpu.CompilerParams(
            dimension_semantics=("parallel",)),
    )(x, gamma, beta, wq, wk, wv, bq, bk, bv, wo, bo)


def reference_forward(x, params, *, num_heads, ln_eps=1e-5):
    """Pure-JAX mirror of the PyTorch module forward (for validation)."""
    B, N, C = x.shape
    hd = C // num_heads
    scale = hd ** (-0.5)
    gamma, beta = params["ln_weight"], params["ln_bias"]

    mean = x.mean(-1, keepdims=True)
    var = ((x - mean) ** 2).mean(-1, keepdims=True)
    xn = (x - mean) / jnp.sqrt(var + ln_eps) * gamma + beta

    qkv = xn @ params["qkv_weight"].T + params["qkv_bias"]           # (B,N,3C)
    qkv = qkv.reshape(B, N, 3, num_heads, hd).transpose(2, 0, 3, 1, 4)
    q, k, v = qkv[0], qkv[1], qkv[2]                                 # (B,H,N,hd)
    attn = (q @ jnp.swapaxes(k, -2, -1)) * scale
    attn = jax.nn.softmax(attn, axis=-1)
    out = jnp.swapaxes(attn @ v, 1, 2).reshape(B, N, C)
    out = out @ params["proj_weight"].T + params["proj_bias"]
    return x + out


if __name__ == "__main__":
    key = jax.random.PRNGKey(0)
    B, N, C, H = 2, 8, 32, 8
    ks = jax.random.split(key, 7)

    x = jax.random.normal(ks[0], (B, N, C), dtype=jnp.float32)
    params = {
        "ln_weight": 1.0 + 0.1 * jax.random.normal(ks[1], (C,), jnp.float32),
        "ln_bias": 0.1 * jax.random.normal(ks[2], (C,), jnp.float32),
        "qkv_weight": jax.random.normal(ks[3], (3 * C, C), jnp.float32)
                      / jnp.sqrt(jnp.float32(C)),
        "qkv_bias": 0.1 * jax.random.normal(ks[4], (3 * C,), jnp.float32),
        "proj_weight": jax.random.normal(ks[5], (C, C), jnp.float32)
                       / jnp.sqrt(jnp.float32(C)),
        "proj_bias": 0.1 * jax.random.normal(ks[6], (C,), jnp.float32),
    }

    fwd = jax.jit(functools.partial(multihead_attention_with_prenorm,
                                    num_heads=H))
    out = fwd(x, params)
    out = jax.block_until_ready(out)

    ref = reference_forward(x, params, num_heads=H)
    assert out.shape == (B, N, C)
    max_err = float(jnp.max(jnp.abs(out - ref)))
    assert max_err < 2e-3, f"max abs err {max_err}"

    print("KERNEL_OK")
</pallas_src>

<mosaic_0001>
module attributes {stable_mosaic.version = 11 : i64} {
  func.func @mha_prenorm_kernel(%arg0: i32, %arg1: memref<1x8x32xf32, #tpu.memory_space<vmem>>, %arg2: memref<1x32xf32, #tpu.memory_space<vmem>>, %arg3: memref<1x32xf32, #tpu.memory_space<vmem>>, %arg4: memref<32x32xf32, #tpu.memory_space<vmem>>, %arg5: memref<32x32xf32, #tpu.memory_space<vmem>>, %arg6: memref<32x32xf32, #tpu.memory_space<vmem>>, %arg7: memref<1x32xf32, #tpu.memory_space<vmem>>, %arg8: memref<1x32xf32, #tpu.memory_space<vmem>>, %arg9: memref<1x32xf32, #tpu.memory_space<vmem>>, %arg10: memref<32x32xf32, #tpu.memory_space<vmem>>, %arg11: memref<1x32xf32, #tpu.memory_space<vmem>>, %arg12: memref<1x8x32xf32, #tpu.memory_space<vmem>>) attributes {dimension_semantics = [#tpu.dimension_semantics<parallel>], iteration_bounds = array<i64: 2>, scalar_prefetch = 0 : i64, scratch_operands = 0 : i64, tpu.core_type = #tpu.core_type<tc>, window_params = [{transform_indices = @transform_0, window_bounds = array<i64: 1, 8, 32>}, {pipeline_mode = #tpu.pipeline_mode<synchronous>, transform_indices = @transform_1, window_bounds = array<i64: 1, 32>}, {pipeline_mode = #tpu.pipeline_mode<synchronous>, transform_indices = @transform_2, window_bounds = array<i64: 1, 32>}, {pipeline_mode = #tpu.pipeline_mode<synchronous>, transform_indices = @transform_3, window_bounds = array<i64: 32, 32>}, {pipeline_mode = #tpu.pipeline_mode<synchronous>, transform_indices = @transform_4, window_bounds = array<i64: 32, 32>}, {pipeline_mode = #tpu.pipeline_mode<synchronous>, transform_indices = @transform_5, window_bounds = array<i64: 32, 32>}, {pipeline_mode = #tpu.pipeline_mode<synchronous>, transform_indices = @transform_6, window_bounds = array<i64: 1, 32>}, {pipeline_mode = #tpu.pipeline_mode<synchronous>, transform_indices = @transform_7, window_bounds = array<i64: 1, 32>}, {pipeline_mode = #tpu.pipeline_mode<synchronous>, transform_indices = @transform_8, window_bounds = array<i64: 1, 32>}, {pipeline_mode = #tpu.pipeline_mode<synchronous>, transform_indices = @transform_9, window_bounds = array<i64: 32, 32>}, {pipeline_mode = #tpu.pipeline_mode<synchronous>, transform_indices = @transform_10, window_bounds = array<i64: 1, 32>}, {transform_indices = @transform_11, window_bounds = array<i64: 1, 8, 32>}]} {
    %c0 = arith.constant 0 : index
    %c0_0 = arith.constant 0 : index
    %c0_1 = arith.constant 0 : index
    %0 = vector.load %arg1[%c0, %c0_0, %c0_1] : memref<1x8x32xf32, #tpu.memory_space<vmem>>, vector<1x8x32xf32>
    %1 = vector.shape_cast %0 : vector<1x8x32xf32> to vector<8x32xf32>
    %cst = arith.constant dense<0.000000e+00> : vector<8xf32>
    %2 = vector.multi_reduction <add>, %1, %cst [1] : vector<8x32xf32> to vector<8xf32>
    %3 = vector.shape_cast %2 : vector<8xf32> to vector<8x1xf32>
    %cst_2 = arith.constant 3.200000e+01 : f32
    %4 = vector.broadcast %cst_2 : f32 to vector<8x1xf32>
    %5 = arith.divf %3, %4 : vector<8x1xf32>
    %6 = vector.broadcast %5 : vector<8x1xf32> to vector<8x32xf32>
    %7 = arith.subf %1, %6 : vector<8x32xf32>
    %8 = arith.mulf %7, %7 : vector<8x32xf32>
    %cst_3 = arith.constant dense<0.000000e+00> : vector<8xf32>
    %9 = vector.multi_reduction <add>, %8, %cst_3 [1] : vector<8x32xf32> to vector<8xf32>
    %10 = vector.shape_cast %9 : vector<8xf32> to vector<8x1xf32>
    %cst_4 = arith.constant 3.200000e+01 : f32
    %11 = vector.broadcast %cst_4 : f32 to vector<8x1xf32>
    %12 = arith.divf %10, %11 : vector<8x1xf32>
    %cst_5 = arith.constant 9.99999974E-6 : f32
    %13 = vector.broadcast %cst_5 : f32 to vector<8x1xf32>
    %14 = arith.addf %12, %13 : vector<8x1xf32>
    %15 = math.rsqrt %14 : vector<8x1xf32>
    %16 = vector.broadcast %15 : vector<8x1xf32> to vector<8x32xf32>
    %17 = arith.mulf %7, %16 : vector<8x32xf32>
    %c0_6 = arith.constant 0 : index
    %c0_7 = arith.constant 0 : index
    %18 = vector.load %arg2[%c0_6, %c0_7] : memref<1x32xf32, #tpu.memory_space<vmem>>, vector<1x32xf32>
    %19 = vector.broadcast %18 : vector<1x32xf32> to vector<8x32xf32>
    %20 = arith.mulf %17, %19 : vector<8x32xf32>
    %c0_8 = arith.constant 0 : index
    %c0_9 = arith.constant 0 : index
    %21 = vector.load %arg3[%c0_8, %c0_9] : memref<1x32xf32, #tpu.memory_space<vmem>>, vector<1x32xf32>
    %22 = vector.broadcast %21 : vector<1x32xf32> to vector<8x32xf32>
    %23 = arith.addf %20, %22 : vector<8x32xf32>
    %c0_10 = arith.constant 0 : index
    %c0_11 = arith.constant 0 : index
    %24 = vector.load %arg4[%c0_10, %c0_11] : memref<32x32xf32, #tpu.memory_space<vmem>>, vector<32x32xf32>
    %cst_12 = arith.constant dense<0.000000e+00> : vector<8x32xf32>
    %25 = tpu.matmul %23, %24, %cst_12 {dimension_numbers = #tpu.dot_dimension_numbers<[1], [0], [0], [1], [0, 0, 1, 1], [], []>} : vector<8x32xf32>, vector<32x32xf32>, vector<8x32xf32> -> vector<8x32xf32>
    %c0_13 = arith.constant 0 : index
    %c0_14 = arith.constant 0 : index
    %26 = vector.load %arg7[%c0_13, %c0_14] : memref<1x32xf32, #tpu.memory_space<vmem>>, vector<1x32xf32>
    %27 = vector.broadcast %26 : vector<1x32xf32> to vector<8x32xf32>
    %28 = arith.addf %25, %27 : vector<8x32xf32>
    %c0_15 = arith.constant 0 : index
    %c0_16 = arith.constant 0 : index
    %29 = vector.load %arg5[%c0_15, %c0_16] : memref<32x32xf32, #tpu.memory_space<vmem>>, vector<32x32xf32>
    %cst_17 = arith.constant dense<0.000000e+00> : vector<8x32xf32>
    %30 = tpu.matmul %23, %29, %cst_17 {dimension_numbers = #tpu.dot_dimension_numbers<[1], [0], [0], [1], [0, 0, 1, 1], [], []>} : vector<8x32xf32>, vector<32x32xf32>, vector<8x32xf32> -> vector<8x32xf32>
    %c0_18 = arith.constant 0 : index
    %c0_19 = arith.constant 0 : index
    %31 = vector.load %arg8[%c0_18, %c0_19] : memref<1x32xf32, #tpu.memory_space<vmem>>, vector<1x32xf32>
    %32 = vector.broadcast %31 : vector<1x32xf32> to vector<8x32xf32>
    %33 = arith.addf %30, %32 : vector<8x32xf32>
    %c0_20 = arith.constant 0 : index
    %c0_21 = arith.constant 0 : index
    %34 = vector.load %arg6[%c0_20, %c0_21] : memref<32x32xf32, #tpu.memory_space<vmem>>, vector<32x32xf32>
    %cst_22 = arith.constant dense<0.000000e+00> : vector<8x32xf32>
    %35 = tpu.matmul %23, %34, %cst_22 {dimension_numbers = #tpu.dot_dimension_numbers<[1], [0], [0], [1], [0, 0, 1, 1], [], []>} : vector<8x32xf32>, vector<32x32xf32>, vector<8x32xf32> -> vector<8x32xf32>
    %c0_23 = arith.constant 0 : index
    %c0_24 = arith.constant 0 : index
    %36 = vector.load %arg9[%c0_23, %c0_24] : memref<1x32xf32, #tpu.memory_space<vmem>>, vector<1x32xf32>
    %37 = vector.broadcast %36 : vector<1x32xf32> to vector<8x32xf32>
    %38 = arith.addf %35, %37 : vector<8x32xf32>
    %39 = vector.extract_strided_slice %28 {offsets = [0, 0], sizes = [8, 4], strides = [1, 1]} : vector<8x32xf32> to vector<8x4xf32>
    %40 = vector.extract_strided_slice %33 {offsets = [0, 0], sizes = [8, 4], strides = [1, 1]} : vector<8x32xf32> to vector<8x4xf32>
    %41 = vector.extract_strided_slice %38 {offsets = [0, 0], sizes = [8, 4], strides = [1, 1]} : vector<8x32xf32> to vector<8x4xf32>
    %cst_25 = arith.constant dense<0.000000e+00> : vector<8x8xf32>
    %42 = tpu.matmul %39, %40, %cst_25 {dimension_numbers = #tpu.dot_dimension_numbers<[1], [1], [0], [0], [0, 0, 1, 0], [], []>} : vector<8x4xf32>, vector<8x4xf32>, vector<8x8xf32> -> vector<8x8xf32>
    %cst_26 = arith.constant 5.000000e-01 : f32
    %43 = vector.broadcast %cst_26 : f32 to vector<8x8xf32>
    %44 = arith.mulf %42, %43 : vector<8x8xf32>
    %cst_27 = arith.constant dense<0xFF800000> : vector<8xf32>
    %45 = vector.multi_reduction <maximumf>, %44, %cst_27 [1] : vector<8x8xf32> to vector<8xf32>
    %46 = vector.shape_cast %45 : vector<8xf32> to vector<8x1xf32>
    %47 = vector.broadcast %46 : vector<8x1xf32> to vector<8x8xf32>
    %48 = arith.subf %44, %47 : vector<8x8xf32>
    %49 = math.exp %48 : vector<8x8xf32>
    %cst_28 = arith.constant dense<0.000000e+00> : vector<8xf32>
    %50 = vector.multi_reduction <add>, %49, %cst_28 [1] : vector<8x8xf32> to vector<8xf32>
    %51 = vector.shape_cast %50 : vector<8xf32> to vector<8x1xf32>
    %52 = tpu.reciprocal %51 : vector<8x1xf32> -> vector<8x1xf32>
    %53 = vector.broadcast %52 : vector<8x1xf32> to vector<8x8xf32>
    %54 = arith.mulf %49, %53 : vector<8x8xf32>
    %cst_29 = arith.constant dense<0.000000e+00> : vector<8x4xf32>
    %55 = tpu.matmul %54, %41, %cst_29 {dimension_numbers = #tpu.dot_dimension_numbers<[1], [0], [0], [1], [0, 0, 1, 1], [], []>} : vector<8x8xf32>, vector<8x4xf32>, vector<8x4xf32> -> vector<8x4xf32>
    %56 = vector.extract_strided_slice %28 {offsets = [0, 4], sizes = [8, 4], strides = [1, 1]} : vector<8x32xf32> to vector<8x4xf32>
    %57 = vector.extract_strided_slice %33 {offsets = [0, 4], sizes = [8, 4], strides = [1, 1]} : vector<8x32xf32> to vector<8x4xf32>
    %58 = vector.extract_strided_slice %38 {offsets = [0, 4], sizes = [8, 4], strides = [1, 1]} : vector<8x32xf32> to vector<8x4xf32>
    %cst_30 = arith.constant dense<0.000000e+00> : vector<8x8xf32>
    %59 = tpu.matmul %56, %57, %cst_30 {dimension_numbers = #tpu.dot_dimension_numbers<[1], [1], [0], [0], [0, 0, 1, 0], [], []>} : vector<8x4xf32>, vector<8x4xf32>, vector<8x8xf32> -> vector<8x8xf32>
    %cst_31 = arith.constant 5.000000e-01 : f32
    %60 = vector.broadcast %cst_31 : f32 to vector<8x8xf32>
    %61 = arith.mulf %59, %60 : vector<8x8xf32>
    %cst_32 = arith.constant dense<0xFF800000> : vector<8xf32>
    %62 = vector.multi_reduction <maximumf>, %61, %cst_32 [1] : vector<8x8xf32> to vector<8xf32>
    %63 = vector.shape_cast %62 : vector<8xf32> to vector<8x1xf32>
    %64 = vector.broadcast %63 : vector<8x1xf32> to vector<8x8xf32>
    %65 = arith.subf %61, %64 : vector<8x8xf32>
    %66 = math.exp %65 : vector<8x8xf32>
    %cst_33 = arith.constant dense<0.000000e+00> : vector<8xf32>
    %67 = vector.multi_reduction <add>, %66, %cst_33 [1] : vector<8x8xf32> to vector<8xf32>
    %68 = vector.shape_cast %67 : vector<8xf32> to vector<8x1xf32>
    %69 = tpu.reciprocal %68 : vector<8x1xf32> -> vector<8x1xf32>
    %70 = vector.broadcast %69 : vector<8x1xf32> to vector<8x8xf32>
    %71 = arith.mulf %66, %70 : vector<8x8xf32>
    %cst_34 = arith.constant dense<0.000000e+00> : vector<8x4xf32>
    %72 = tpu.matmul %71, %58, %cst_34 {dimension_numbers = #tpu.dot_dimension_numbers<[1], [0], [0], [1], [0, 0, 1, 1], [], []>} : vector<8x8xf32>, vector<8x4xf32>, vector<8x4xf32> -> vector<8x4xf32>
    %73 = vector.extract_strided_slice %28 {offsets = [0, 8], sizes = [8, 4], strides = [1, 1]} : vector<8x32xf32> to vector<8x4xf32>
    %74 = vector.extract_strided_slice %33 {offsets = [0, 8], sizes = [8, 4], strides = [1, 1]} : vector<8x32xf32> to vector<8x4xf32>
    %75 = vector.extract_strided_slice %38 {offsets = [0, 8], sizes = [8, 4], strides = [1, 1]} : vector<8x32xf32> to vector<8x4xf32>
    %cst_35 = arith.constant dense<0.000000e+00> : vector<8x8xf32>
    %76 = tpu.matmul %73, %74, %cst_35 {dimension_numbers = #tpu.dot_dimension_numbers<[1], [1], [0], [0], [0, 0, 1, 0], [], []>} : vector<8x4xf32>, vector<8x4xf32>, vector<8x8xf32> -> vector<8x8xf32>
    %cst_36 = arith.constant 5.000000e-01 : f32
    %77 = vector.broadcast %cst_36 : f32 to vector<8x8xf32>
    %78 = arith.mulf %76, %77 : vector<8x8xf32>
    %cst_37 = arith.constant dense<0xFF800000> : vector<8xf32>
    %79 = vector.multi_reduction <maximumf>, %78, %cst_37 [1] : vector<8x8xf32> to vector<8xf32>
    %80 = vector.shape_cast %79 : vector<8xf32> to vector<8x1xf32>
    %81 = vector.broadcast %80 : vector<8x1xf32> to vector<8x8xf32>
    %82 = arith.subf %78, %81 : vector<8x8xf32>
    %83 = math.exp %82 : vector<8x8xf32>
    %cst_38 = arith.constant dense<0.000000e+00> : vector<8xf32>
    %84 = vector.multi_reduction <add>, %83, %cst_38 [1] : vector<8x8xf32> to vector<8xf32>
    %85 = vector.shape_cast %84 : vector<8xf32> to vector<8x1xf32>
    %86 = tpu.reciprocal %85 : vector<8x1xf32> -> vector<8x1xf32>
    %87 = vector.broadcast %86 : vector<8x1xf32> to vector<8x8xf32>
    %88 = arith.mulf %83, %87 : vector<8x8xf32>
    %cst_39 = arith.constant dense<0.000000e+00> : vector<8x4xf32>
    %89 = tpu.matmul %88, %75, %cst_39 {dimension_numbers = #tpu.dot_dimension_numbers<[1], [0], [0], [1], [0, 0, 1, 1], [], []>} : vector<8x8xf32>, vector<8x4xf32>, vector<8x4xf32> -> vector<8x4xf32>
    %90 = vector.extract_strided_slice %28 {offsets = [0, 12], sizes = [8, 4], strides = [1, 1]} : vector<8x32xf32> to vector<8x4xf32>
    %91 = vector.extract_strided_slice %33 {offsets = [0, 12], sizes = [8, 4], strides = [1, 1]} : vector<8x32xf32> to vector<8x4xf32>
    %92 = vector.extract_strided_slice %38 {offsets = [0, 12], sizes = [8, 4], strides = [1, 1]} : vector<8x32xf32> to vector<8x4xf32>
    %cst_40 = arith.constant dense<0.000000e+00> : vector<8x8xf32>
    %93 = tpu.matmul %90, %91, %cst_40 {dimension_numbers = #tpu.dot_dimension_numbers<[1], [1], [0], [0], [0, 0, 1, 0], [], []>} : vector<8x4xf32>, vector<8x4xf32>, vector<8x8xf32> -> vector<8x8xf32>
    %cst_41 = arith.constant 5.000000e-01 : f32
    %94 = vector.broadcast %cst_41 : f32 to vector<8x8xf32>
    %95 = arith.mulf %93, %94 : vector<8x8xf32>
    %cst_42 = arith.constant dense<0xFF800000> : vector<8xf32>
    %96 = vector.multi_reduction <maximumf>, %95, %cst_42 [1] : vector<8x8xf32> to vector<8xf32>
    %97 = vector.shape_cast %96 : vector<8xf32> to vector<8x1xf32>
    %98 = vector.broadcast %97 : vector<8x1xf32> to vector<8x8xf32>
    %99 = arith.subf %95, %98 : vector<8x8xf32>
    %100 = math.exp %99 : vector<8x8xf32>
    %cst_43 = arith.constant dense<0.000000e+00> : vector<8xf32>
    %101 = vector.multi_reduction <add>, %100, %cst_43 [1] : vector<8x8xf32> to vector<8xf32>
    %102 = vector.shape_cast %101 : vector<8xf32> to vector<8x1xf32>
    %103 = tpu.reciprocal %102 : vector<8x1xf32> -> vector<8x1xf32>
    %104 = vector.broadcast %103 : vector<8x1xf32> to vector<8x8xf32>
    %105 = arith.mulf %100, %104 : vector<8x8xf32>
    %cst_44 = arith.constant dense<0.000000e+00> : vector<8x4xf32>
    %106 = tpu.matmul %105, %92, %cst_44 {dimension_numbers = #tpu.dot_dimension_numbers<[1], [0], [0], [1], [0, 0, 1, 1], [], []>} : vector<8x8xf32>, vector<8x4xf32>, vector<8x4xf32> -> vector<8x4xf32>
    %107 = vector.extract_strided_slice %28 {offsets = [0, 16], sizes = [8, 4], strides = [1, 1]} : vector<8x32xf32> to vector<8x4xf32>
    %108 = vector.extract_strided_slice %33 {offsets = [0, 16], sizes = [8, 4], strides = [1, 1]} : vector<8x32xf32> to vector<8x4xf32>
    %109 = vector.extract_strided_slice %38 {offsets = [0, 16], sizes = [8, 4], strides = [1, 1]} : vector<8x32xf32> to vector<8x4xf32>
    %cst_45 = arith.constant dense<0.000000e+00> : vector<8x8xf32>
    %110 = tpu.matmul %107, %108, %cst_45 {dimension_numbers = #tpu.dot_dimension_numbers<[1], [1], [0], [0], [0, 0, 1, 0], [], []>} : vector<8x4xf32>, vector<8x4xf32>, vector<8x8xf32> -> vector<8x8xf32>
    %cst_46 = arith.constant 5.000000e-01 : f32
    %111 = vector.broadcast %cst_46 : f32 to vector<8x8xf32>
    %112 = arith.mulf %110, %111 : vector<8x8xf32>
    %cst_47 = arith.constant dense<0xFF800000> : vector<8xf32>
    %113 = vector.multi_reduction <maximumf>, %112, %cst_47 [1] : vector<8x8xf32> to vector<8xf32>
    %114 = vector.shape_cast %113 : vector<8xf32> to vector<8x1xf32>
    %115 = vector.broadcast %114 : vector<8x1xf32> to vector<8x8xf32>
    %116 = arith.subf %112, %115 : vector<8x8xf32>
    %117 = math.exp %116 : vector<8x8xf32>
    %cst_48 = arith.constant dense<0.000000e+00> : vector<8xf32>
    %118 = vector.multi_reduction <add>, %117, %cst_48 [1] : vector<8x8xf32> to vector<8xf32>
    %119 = vector.shape_cast %118 : vector<8xf32> to vector<8x1xf32>
    %120 = tpu.reciprocal %119 : vector<8x1xf32> -> vector<8x1xf32>
    %121 = vector.broadcast %120 : vector<8x1xf32> to vector<8x8xf32>
    %122 = arith.mulf %117, %121 : vector<8x8xf32>
    %cst_49 = arith.constant dense<0.000000e+00> : vector<8x4xf32>
    %123 = tpu.matmul %122, %109, %cst_49 {dimension_numbers = #tpu.dot_dimension_numbers<[1], [0], [0], [1], [0, 0, 1, 1], [], []>} : vector<8x8xf32>, vector<8x4xf32>, vector<8x4xf32> -> vector<8x4xf32>
    %124 = vector.extract_strided_slice %28 {offsets = [0, 20], sizes = [8, 4], strides = [1, 1]} : vector<8x32xf32> to vector<8x4xf32>
    %125 = vector.extract_strided_slice %33 {offsets = [0, 20], sizes = [8, 4], strides = [1, 1]} : vector<8x32xf32> to vector<8x4xf32>
    %126 = vector.extract_strided_slice %38 {offsets = [0, 20], sizes = [8, 4], strides = [1, 1]} : vector<8x32xf32> to vector<8x4xf32>
    %cst_50 = arith.constant dense<0.000000e+00> : vector<8x8xf32>
    %127 = tpu.matmul %124, %125, %cst_50 {dimension_numbers = #tpu.dot_dimension_numbers<[1], [1], [0], [0], [0, 0, 1, 0], [], []>} : vector<8x4xf32>, vector<8x4xf32>, vector<8x8xf32> -> vector<8x8xf32>
    %cst_51 = arith.constant 5.000000e-01 : f32
    %128 = vector.broadcast %cst_51 : f32 to vector<8x8xf32>
    %129 = arith.mulf %127, %128 : vector<8x8xf32>
    %cst_52 = arith.constant dense<0xFF800000> : vector<8xf32>
    %130 = vector.multi_reduction <maximumf>, %129, %cst_52 [1] : vector<8x8xf32> to vector<8xf32>
    %131 = vector.shape_cast %130 : vector<8xf32> to vector<8x1xf32>
    %132 = vector.broadcast %131 : vector<8x1xf32> to vector<8x8xf32>
    %133 = arith.subf %129, %132 : vector<8x8xf32>
    %134 = math.exp %133 : vector<8x8xf32>
    %cst_53 = arith.constant dense<0.000000e+00> : vector<8xf32>
    %135 = vector.multi_reduction <add>, %134, %cst_53 [1] : vector<8x8xf32> to vector<8xf32>
    %136 = vector.shape_cast %135 : vector<8xf32> to vector<8x1xf32>
    %137 = tpu.reciprocal %136 : vector<8x1xf32> -> vector<8x1xf32>
    %138 = vector.broadcast %137 : vector<8x1xf32> to vector<8x8xf32>
    %139 = arith.mulf %134, %138 : vector<8x8xf32>
    %cst_54 = arith.constant dense<0.000000e+00> : vector<8x4xf32>
    %140 = tpu.matmul %139, %126, %cst_54 {dimension_numbers = #tpu.dot_dimension_numbers<[1], [0], [0], [1], [0, 0, 1, 1], [], []>} : vector<8x8xf32>, vector<8x4xf32>, vector<8x4xf32> -> vector<8x4xf32>
    %141 = vector.extract_strided_slice %28 {offsets = [0, 24], sizes = [8, 4], strides = [1, 1]} : vector<8x32xf32> to vector<8x4xf32>
    %142 = vector.extract_strided_slice %33 {offsets = [0, 24], sizes = [8, 4], strides = [1, 1]} : vector<8x32xf32> to vector<8x4xf32>
    %143 = vector.extract_strided_slice %38 {offsets = [0, 24], sizes = [8, 4], strides = [1, 1]} : vector<8x32xf32> to vector<8x4xf32>
    %cst_55 = arith.constant dense<0.000000e+00> : vector<8x8xf32>
    %144 = tpu.matmul %141, %142, %cst_55 {dimension_numbers = #tpu.dot_dimension_numbers<[1], [1], [0], [0], [0, 0, 1, 0], [], []>} : vector<8x4xf32>, vector<8x4xf32>, vector<8x8xf32> -> vector<8x8xf32>
    %cst_56 = arith.constant 5.000000e-01 : f32
    %145 = vector.broadcast %cst_56 : f32 to vector<8x8xf32>
    %146 = arith.mulf %144, %145 : vector<8x8xf32>
    %cst_57 = arith.constant dense<0xFF800000> : vector<8xf32>
    %147 = vector.multi_reduction <maximumf>, %146, %cst_57 [1] : vector<8x8xf32> to vector<8xf32>
    %148 = vector.shape_cast %147 : vector<8xf32> to vector<8x1xf32>
    %149 = vector.broadcast %148 : vector<8x1xf32> to vector<8x8xf32>
    %150 = arith.subf %146, %149 : vector<8x8xf32>
    %151 = math.exp %150 : vector<8x8xf32>
    %cst_58 = arith.constant dense<0.000000e+00> : vector<8xf32>
    %152 = vector.multi_reduction <add>, %151, %cst_58 [1] : vector<8x8xf32> to vector<8xf32>
    %153 = vector.shape_cast %152 : vector<8xf32> to vector<8x1xf32>
    %154 = tpu.reciprocal %153 : vector<8x1xf32> -> vector<8x1xf32>
    %155 = vector.broadcast %154 : vector<8x1xf32> to vector<8x8xf32>
    %156 = arith.mulf %151, %155 : vector<8x8xf32>
    %cst_59 = arith.constant dense<0.000000e+00> : vector<8x4xf32>
    %157 = tpu.matmul %156, %143, %cst_59 {dimension_numbers = #tpu.dot_dimension_numbers<[1], [0], [0], [1], [0, 0, 1, 1], [], []>} : vector<8x8xf32>, vector<8x4xf32>, vector<8x4xf32> -> vector<8x4xf32>
    %158 = vector.extract_strided_slice %28 {offsets = [0, 28], sizes = [8, 4], strides = [1, 1]} : vector<8x32xf32> to vector<8x4xf32>
    %159 = vector.extract_strided_slice %33 {offsets = [0, 28], sizes = [8, 4], strides = [1, 1]} : vector<8x32xf32> to vector<8x4xf32>
    %160 = vector.extract_strided_slice %38 {offsets = [0, 28], sizes = [8, 4], strides = [1, 1]} : vector<8x32xf32> to vector<8x4xf32>
    %cst_60 = arith.constant dense<0.000000e+00> : vector<8x8xf32>
    %161 = tpu.matmul %158, %159, %cst_60 {dimension_numbers = #tpu.dot_dimension_numbers<[1], [1], [0], [0], [0, 0, 1, 0], [], []>} : vector<8x4xf32>, vector<8x4xf32>, vector<8x8xf32> -> vector<8x8xf32>
    %cst_61 = arith.constant 5.000000e-01 : f32
    %162 = vector.broadcast %cst_61 : f32 to vector<8x8xf32>
    %163 = arith.mulf %161, %162 : vector<8x8xf32>
    %cst_62 = arith.constant dense<0xFF800000> : vector<8xf32>
    %164 = vector.multi_reduction <maximumf>, %163, %cst_62 [1] : vector<8x8xf32> to vector<8xf32>
    %165 = vector.shape_cast %164 : vector<8xf32> to vector<8x1xf32>
    %166 = vector.broadcast %165 : vector<8x1xf32> to vector<8x8xf32>
    %167 = arith.subf %163, %166 : vector<8x8xf32>
    %168 = math.exp %167 : vector<8x8xf32>
    %cst_63 = arith.constant dense<0.000000e+00> : vector<8xf32>
    %169 = vector.multi_reduction <add>, %168, %cst_63 [1] : vector<8x8xf32> to vector<8xf32>
    %170 = vector.shape_cast %169 : vector<8xf32> to vector<8x1xf32>
    %171 = tpu.reciprocal %170 : vector<8x1xf32> -> vector<8x1xf32>
    %172 = vector.broadcast %171 : vector<8x1xf32> to vector<8x8xf32>
    %173 = arith.mulf %168, %172 : vector<8x8xf32>
    %cst_64 = arith.constant dense<0.000000e+00> : vector<8x4xf32>
    %174 = tpu.matmul %173, %160, %cst_64 {dimension_numbers = #tpu.dot_dimension_numbers<[1], [0], [0], [1], [0, 0, 1, 1], [], []>} : vector<8x8xf32>, vector<8x4xf32>, vector<8x4xf32> -> vector<8x4xf32>
    %175 = tpu.concatenate %55, %72, %89, %106, %123, %140, %157, %174 in 1 : vector<8x4xf32>, vector<8x4xf32>, vector<8x4xf32>, vector<8x4xf32>, vector<8x4xf32>, vector<8x4xf32>, vector<8x4xf32>, vector<8x4xf32> -> vector<8x32xf32>
    %c0_65 = arith.constant 0 : index
    %c0_66 = arith.constant 0 : index
    %176 = vector.load %arg10[%c0_65, %c0_66] : memref<32x32xf32, #tpu.memory_space<vmem>>, vector<32x32xf32>
    %cst_67 = arith.constant dense<0.000000e+00> : vector<8x32xf32>
    %177 = tpu.matmul %175, %176, %cst_67 {dimension_numbers = #tpu.dot_dimension_numbers<[1], [0], [0], [1], [0, 0, 1, 1], [], []>} : vector<8x32xf32>, vector<32x32xf32>, vector<8x32xf32> -> vector<8x32xf32>
    %c0_68 = arith.constant 0 : index
    %c0_69 = arith.constant 0 : index
    %178 = vector.load %arg11[%c0_68, %c0_69] : memref<1x32xf32, #tpu.memory_space<vmem>>, vector<1x32xf32>
    %179 = vector.broadcast %178 : vector<1x32xf32> to vector<8x32xf32>
    %180 = arith.addf %177, %179 : vector<8x32xf32>
    %181 = arith.addf %1, %180 : vector<8x32xf32>
    %c0_70 = arith.constant 0 : index
    %c0_71 = arith.constant 0 : index
    %c0_72 = arith.constant 0 : index
    %182 = vector.load %arg12[%c0_70, %c0_71, %c0_72] : memref<1x8x32xf32, #tpu.memory_space<vmem>>, vector<1x8x32xf32>
    %183 = vector.shape_cast %182 : vector<1x8x32xf32> to vector<8x32xf32>
    %184 = vector.shape_cast %181 : vector<8x32xf32> to vector<1x8x32xf32>
    tpu.vector_store %arg12[%c0_70, %c0_71, %c0_72], %184 {strides = array<i32>} : memref<1x8x32xf32, #tpu.memory_space<vmem>>, vector<1x8x32xf32>,
    return
  }
  func.func @transform_0(%arg0: i32) -> (i32, i32, i32) {
    %c0_i32 = arith.constant 0 : i32
    %c0_i32_0 = arith.constant 0 : i32
    %c0_i32_1 = arith.constant 0 : i32
    return %arg0, %c0_i32, %c0_i32_0 : i32, i32, i32
  }
  func.func @transform_1(%arg0: i32) -> (i32, i32) {
    %c0_i32 = arith.constant 0 : i32
    %c0_i32_0 = arith.constant 0 : i32
    %c0_i32_1 = arith.constant 0 : i32
    return %c0_i32, %c0_i32_0 : i32, i32
  }
  func.func @transform_2(%arg0: i32) -> (i32, i32) {
    %c0_i32 = arith.constant 0 : i32
    %c0_i32_0 = arith.constant 0 : i32
    %c0_i32_1 = arith.constant 0 : i32
    return %c0_i32, %c0_i32_0 : i32, i32
  }
  func.func @transform_3(%arg0: i32) -> (i32, i32) {
    %c0_i32 = arith.constant 0 : i32
    %c0_i32_0 = arith.constant 0 : i32
    %c0_i32_1 = arith.constant 0 : i32
    return %c0_i32, %c0_i32_0 : i32, i32
  }
  func.func @transform_4(%arg0: i32) -> (i32, i32) {
    %c0_i32 = arith.constant 0 : i32
    %c0_i32_0 = arith.constant 0 : i32
    %c0_i32_1 = arith.constant 0 : i32
    return %c0_i32, %c0_i32_0 : i32, i32
  }
  func.func @transform_5(%arg0: i32) -> (i32, i32) {
    %c0_i32 = arith.constant 0 : i32
    %c0_i32_0 = arith.constant 0 : i32
    %c0_i32_1 = arith.constant 0 : i32
    return %c0_i32, %c0_i32_0 : i32, i32
  }
  func.func @transform_6(%arg0: i32) -> (i32, i32) {
    %c0_i32 = arith.constant 0 : i32
    %c0_i32_0 = arith.constant 0 : i32
    %c0_i32_1 = arith.constant 0 : i32
    return %c0_i32, %c0_i32_0 : i32, i32
  }
  func.func @transform_7(%arg0: i32) -> (i32, i32) {
    %c0_i32 = arith.constant 0 : i32
    %c0_i32_0 = arith.constant 0 : i32
    %c0_i32_1 = arith.constant 0 : i32
    return %c0_i32, %c0_i32_0 : i32, i32
  }
  func.func @transform_8(%arg0: i32) -> (i32, i32) {
    %c0_i32 = arith.constant 0 : i32
    %c0_i32_0 = arith.constant 0 : i32
    %c0_i32_1 = arith.constant 0 : i32
    return %c0_i32, %c0_i32_0 : i32, i32
  }
  func.func @transform_9(%arg0: i32) -> (i32, i32) {
    %c0_i32 = arith.constant 0 : i32
    %c0_i32_0 = arith.constant 0 : i32
    %c0_i32_1 = arith.constant 0 : i32
    return %c0_i32, %c0_i32_0 : i32, i32
  }
  func.func @transform_10(%arg0: i32) -> (i32, i32) {
    %c0_i32 = arith.constant 0 : i32
    %c0_i32_0 = arith.constant 0 : i32
    %c0_i32_1 = arith.constant 0 : i32
    return %c0_i32, %c0_i32_0 : i32, i32
  }
  func.func @transform_11(%arg0: i32) -> (i32, i32, i32) {
    %c0_i32 = arith.constant 0 : i32
    %c0_i32_0 = arith.constant 0 : i32
    %c0_i32_1 = arith.constant 0 : i32
    return %arg0, %c0_i32, %c0_i32_0 : i32, i32, i32
  }
}

</mosaic_0001>

<llo_original>
// kernel: multihead_attention_with_prenorm.1
$region0: #{multihead_attention_with_prenorm.1}
  #allocation0 [shape = 'u32[]', space=smem, size = 0x4, offset = 0x4, fixed_abs, tag = 'smem constant byte address 0x4 - core index']
  #allocation1 [shape = 'u32[144,128]{1,0:T(1,128)}', space=vmem, size = 0x12000, scoped, tag = 'internal scratch']
  %s0 = inlined_call_operand.vmem [shape: f32[2,8,32], index: 0, kind: input, shape index: {}]
  %s1 = inlined_call_operand.vmem [shape: f32[1,32], index: 1, kind: input, shape index: {}]
  %s2 = inlined_call_operand.vmem [shape: f32[1,32], index: 2, kind: input, shape index: {}]
  %s3 = inlined_call_operand.vmem [shape: f32[32,32], index: 3, kind: input, shape index: {}]
  %s4 = inlined_call_operand.vmem [shape: f32[32,32], index: 4, kind: input, shape index: {}]
  %s5 = inlined_call_operand.vmem [shape: f32[32,32], index: 5, kind: input, shape index: {}]
  %s6 = inlined_call_operand.vmem [shape: f32[1,32], index: 6, kind: input, shape index: {}]
  %s7 = inlined_call_operand.vmem [shape: f32[1,32], index: 7, kind: input, shape index: {}]
  %s8 = inlined_call_operand.vmem [shape: f32[1,32], index: 8, kind: input, shape index: {}]
  %s9 = inlined_call_operand.vmem [shape: f32[32,32], index: 9, kind: input, shape index: {}]
  %s10 = inlined_call_operand.vmem [shape: f32[1,32], index: 10, kind: input, shape index: {}]
  %s11 = inlined_call_operand.hbm [shape: f32[2,8,32], index: 11, kind: output, shape index: {}]
  %s12 = sld [smem:[#allocation0]]
  $region77: #{multihead_attention_with_prenorm.1} parent=0
    _
  %s14 = ssub.s32 1, %s12
  %s15 = scalar_select 0, %s14, %s12
  $region1: #{multihead_attention_with_prenorm.1} parent=0
    #allocation2 [shape = 'u8[8192]{0}', space=vmem, size = 0x2000, scoped, tag = 'output window, operand 0']
    #allocation3 [shape = 's32[2]{0}', space=sflag, size = 0x8, scoped, tag = 'scoped memory for multihead_attention_with_prenorm.1']
    %16 = vsyncpa [#allocation3], 0
    %s17 = scalar_lea.sflag [#allocation3], 1
    %18 = vsyncpa %s17, 0
    loop: start=0, step=1, limit=4
    $region2: #{multihead_attention_with_prenorm.1} parent=1 // loop_pre_header
      _
    $region3: #{multihead_attention_with_prenorm.1} parent=1 // loop_header
      %s20 = sphi 0, %s24
      %p21 = scmp.ge.s32.totalorder %s20, 4
      %s30 = sphi 0, %s32
      %s33 = sphi 0, %s30
      %s34 = sphi 0, %s33
      %s50 = sphi 0, %s34
      %s54 = sphi 0, %s54
      %s56 = sphi 0, %s54
      %s57 = sphi 0, %s56
      %s71 = sphi 0, %s57
      %s75 = sphi 0, %s75
      %s77 = sphi 0, %s75
      %s78 = sphi 0, %s77
      %s92 = sphi 0, %s78
      %s96 = sphi 0, %s96
      %s98 = sphi 0, %s96
      %s99 = sphi 0, %s98
      %s113 = sphi 0, %s99
      %s117 = sphi 0, %s117
      %s119 = sphi 0, %s117
      %s120 = sphi 0, %s119
      %s134 = sphi 0, %s120
      %s138 = sphi 0, %s138
      %s140 = sphi 0, %s138
      %s141 = sphi 0, %s140
      %s155 = sphi 0, %s141
      %s159 = sphi 0, %s159
      %s161 = sphi 0, %s159
      %s162 = sphi 0, %s161
      %s176 = sphi 0, %s162
      %s180 = sphi 0, %s180
      %s182 = sphi 0, %s180
      %s183 = sphi 0, %s182
      %s197 = sphi 0, %s183
      %s201 = sphi 0, %s201
      %s203 = sphi 0, %s201
      %s204 = sphi 0, %s203
      %s218 = sphi 0, %s204
      %s222 = sphi 0, %s222
      %s224 = sphi 0, %s222
      %s225 = sphi 0, %s224
      %s239 = sphi 0, %s225
      %s243 = sphi 0, %s243
      %s245 = sphi 0, %s243
      %s246 = sphi 0, %s245
      %s260 = sphi 0, %s246
      %s266 = sphi 0, %s268
      %s269 = sphi 0, %s266
      %s270 = sphi 0, %s269
      %s286 = sphi 0, %s270
    $region4: #{multihead_attention_with_prenorm.1} parent=1 // loop_header_branch
      %23 = sbr.rel (%p21) target = $region8
    $region5: #{multihead_attention_with_prenorm.1} parent=1 // loop_body
      %s25 = ssub.s32 %s20, 1
      %s26 = ssub.s32 %s20, 2
      %s27 = sadd.s32 %s20, 1
      %s28 = ssub.s32 %s20, %s27
      %p29 = scmp.eq.s32.totalorder %s28, 0
      %s31 = sadd.s32 %s30, 1
      %s32 = scalar_select %p29, %s30, %s31
      %p35 = pneg %p29
      %p36 = scmp.eq.s32.totalorder %s20, 1
      %p37 = por %p35, %p36
      %p38 = scmp.ne.s32.totalorder %s30, %s33
      %p39 = scmp.eq.s32.totalorder %s20, 0
      %p40 = por %p38, %p39
      %p41 = scmp.ne.s32.totalorder %s30, %s33
      %p42 = scmp.eq.s32.totalorder %s25, 1
      %p43 = por %p41, %p42
      %p44 = scmp.ne.s32.totalorder %s33, %s34
      %p45 = scmp.eq.s32.totalorder %s25, 0
      %p46 = por %p44, %p45
      %p47 = scmp.ne.s32.totalorder %s33, %s34
      %p48 = scmp.eq.s32.totalorder %s26, 1
      %p49 = por %p47, %p48
      %p51 = scmp.ne.s32.totalorder %s34, %s50
      %p52 = scmp.eq.s32.totalorder %s26, 0
      %p53 = por %p51, %p52
      %s55 = sadd.s32 %s54, 1
      %p58 = scmp.eq.s32.totalorder %s20, 1
      %p59 = scmp.ne.s32.totalorder %s54, %s56
      %p60 = scmp.eq.s32.totalorder %s20, 0
      %p61 = por %p59, %p60
      %p62 = scmp.ne.s32.totalorder %s54, %s56
      %p63 = scmp.eq.s32.totalorder %s25, 1
      %p64 = por %p62, %p63
      %p65 = scmp.ne.s32.totalorder %s56, %s57
      %p66 = scmp.eq.s32.totalorder %s25, 0
      %p67 = por %p65, %p66
      %p68 = scmp.ne.s32.totalorder %s56, %s57
      %p69 = scmp.eq.s32.totalorder %s26, 1
      %p70 = por %p68, %p69
      %p72 = scmp.ne.s32.totalorder %s57, %s71
      %p73 = scmp.eq.s32.totalorder %s26, 0
      %p74 = por %p72, %p73
      %s76 = sadd.s32 %s75, 1
      %p79 = scmp.eq.s32.totalorder %s20, 1
      %p80 = scmp.ne.s32.totalorder %s75, %s77
      %p81 = scmp.eq.s32.totalorder %s20, 0
      %p82 = por %p80, %p81
      %p83 = scmp.ne.s32.totalorder %s75, %s77
      %p84 = scmp.eq.s32.totalorder %s25, 1
      %p85 = por %p83, %p84
      %p86 = scmp.ne.s32.totalorder %s77, %s78
      %p87 = scmp.eq.s32.totalorder %s25, 0
      %p88 = por %p86, %p87
      %p89 = scmp.ne.s32.totalorder %s77, %s78
      %p90 = scmp.eq.s32.totalorder %s26, 1
      %p91 = por %p89, %p90
      %p93 = scmp.ne.s32.totalorder %s78, %s92
      %p94 = scmp.eq.s32.totalorder %s26, 0
      %p95 = por %p93, %p94
      %s97 = sadd.s32 %s96, 1
      %p100 = scmp.eq.s32.totalorder %s20, 1
      %p101 = scmp.ne.s32.totalorder %s96, %s98
      %p102 = scmp.eq.s32.totalorder %s20, 0
      %p103 = por %p101, %p102
      %p104 = scmp.ne.s32.totalorder %s96, %s98
      %p105 = scmp.eq.s32.totalorder %s25, 1
      %p106 = por %p104, %p105
      %p107 = scmp.ne.s32.totalorder %s98, %s99
      %p108 = scmp.eq.s32.totalorder %s25, 0
      %p109 = por %p107, %p108
      %p110 = scmp.ne.s32.totalorder %s98, %s99
      %p111 = scmp.eq.s32.totalorder %s26, 1
      %p112 = por %p110, %p111
      %p114 = scmp.ne.s32.totalorder %s99, %s113
      %p115 = scmp.eq.s32.totalorder %s26, 0
      %p116 = por %p114, %p115
      %s118 = sadd.s32 %s117, 1
      %p121 = scmp.eq.s32.totalorder %s20, 1
      %p122 = scmp.ne.s32.totalorder %s117, %s119
      %p123 = scmp.eq.s32.totalorder %s20, 0
      %p124 = por %p122, %p123
      %p125 = scmp.ne.s32.totalorder %s117, %s119
      %p126 = scmp.eq.s32.totalorder %s25, 1
      %p127 = por %p125, %p126
      %p128 = scmp.ne.s32.totalorder %s119, %s120
      %p129 = scmp.eq.s32.totalorder %s25, 0
      %p130 = por %p128, %p129
      %p131 = scmp.ne.s32.totalorder %s119, %s120
      %p132 = scmp.eq.s32.totalorder %s26, 1
      %p133 = por %p131, %p132
      %p135 = scmp.ne.s32.totalorder %s120, %s134
      %p136 = scmp.eq.s32.totalorder %s26, 0
      %p137 = por %p135, %p136
      %s139 = sadd.s32 %s138, 1
      %p142 = scmp.eq.s32.totalorder %s20, 1
      %p143 = scmp.ne.s32.totalorder %s138, %s140
      %p144 = scmp.eq.s32.totalorder %s20, 0
      %p145 = por %p143, %p144
      %p146 = scmp.ne.s32.totalorder %s138, %s140
      %p147 = scmp.eq.s32.totalorder %s25, 1
      %p148 = por %p146, %p147
      %p149 = scmp.ne.s32.totalorder %s140, %s141
      %p150 = scmp.eq.s32.totalorder %s25, 0
      %p151 = por %p149, %p150
      %p152 = scmp.ne.s32.totalorder %s140, %s141
      %p153 = scmp.eq.s32.totalorder %s26, 1
      %p154 = por %p152, %p153
      %p156 = scmp.ne.s32.totalorder %s141, %s155
      %p157 = scmp.eq.s32.totalorder %s26, 0
      %p158 = por %p156, %p157
      %s160 = sadd.s32 %s159, 1
      %p163 = scmp.eq.s32.totalorder %s20, 1
      %p164 = scmp.ne.s32.totalorder %s159, %s161
      %p165 = scmp.eq.s32.totalorder %s20, 0
      %p166 = por %p164, %p165
      %p167 = scmp.ne.s32.totalorder %s159, %s161
      %p168 = scmp.eq.s32.totalorder %s25, 1
      %p169 = por %p167, %p168
      %p170 = scmp.ne.s32.totalorder %s161, %s162
      %p171 = scmp.eq.s32.totalorder %s25, 0
      %p172 = por %p170, %p171
      %p173 = scmp.ne.s32.totalorder %s161, %s162
      %p174 = scmp.eq.s32.totalorder %s26, 1
      %p175 = por %p173, %p174
      %p177 = scmp.ne.s32.totalorder %s162, %s176
      %p178 = scmp.eq.s32.totalorder %s26, 0
      %p179 = por %p177, %p178
      %s181 = sadd.s32 %s180, 1
      %p184 = scmp.eq.s32.totalorder %s20, 1
      %p185 = scmp.ne.s32.totalorder %s180, %s182
      %p186 = scmp.eq.s32.totalorder %s20, 0
      %p187 = por %p185, %p186
      %p188 = scmp.ne.s32.totalorder %s180, %s182
      %p189 = scmp.eq.s32.totalorder %s25, 1
      %p190 = por %p188, %p189
      %p191 = scmp.ne.s32.totalorder %s182, %s183
      %p192 = scmp.eq.s32.totalorder %s25, 0
      %p193 = por %p191, %p192
      %p194 = scmp.ne.s32.totalorder %s182, %s183
      %p195 = scmp.eq.s32.totalorder %s26, 1
      %p196 = por %p194, %p195
      %p198 = scmp.ne.s32.totalorder %s183, %s197
      %p199 = scmp.eq.s32.totalorder %s26, 0
      %p200 = por %p198, %p199
      %s202 = sadd.s32 %s201, 1
      %p205 = scmp.eq.s32.totalorder %s20, 1
      %p206 = scmp.ne.s32.totalorder %s201, %s203
      %p207 = scmp.eq.s32.totalorder %s20, 0
      %p208 = por %p206, %p207
      %p209 = scmp.ne.s32.totalorder %s201, %s203
      %p210 = scmp.eq.s32.totalorder %s25, 1
      %p211 = por %p209, %p210
      %p212 = scmp.ne.s32.totalorder %s203, %s204
      %p213 = scmp.eq.s32.totalorder %s25, 0
      %p214 = por %p212, %p213
      %p215 = scmp.ne.s32.totalorder %s203, %s204
      %p216 = scmp.eq.s32.totalorder %s26, 1
      %p217 = por %p215, %p216
      %p219 = scmp.ne.s32.totalorder %s204, %s218
      %p220 = scmp.eq.s32.totalorder %s26, 0
      %p221 = por %p219, %p220
      %s223 = sadd.s32 %s222, 1
      %p226 = scmp.eq.s32.totalorder %s20, 1
      %p227 = scmp.ne.s32.totalorder %s222, %s224
      %p228 = scmp.eq.s32.totalorder %s20, 0
      %p229 = por %p227, %p228
      %p230 = scmp.ne.s32.totalorder %s222, %s224
      %p231 = scmp.eq.s32.totalorder %s25, 1
      %p232 = por %p230, %p231
      %p233 = scmp.ne.s32.totalorder %s224, %s225
      %p234 = scmp.eq.s32.totalorder %s25, 0
      %p235 = por %p233, %p234
      %p236 = scmp.ne.s32.totalorder %s224, %s225
      %p237 = scmp.eq.s32.totalorder %s26, 1
      %p238 = por %p236, %p237
      %p240 = scmp.ne.s32.totalorder %s225, %s239
      %p241 = scmp.eq.s32.totalorder %s26, 0
      %p242 = por %p240, %p241
      %s244 = sadd.s32 %s243, 1
      %p247 = scmp.eq.s32.totalorder %s20, 1
      %p248 = scmp.ne.s32.totalorder %s243, %s245
      %p249 = scmp.eq.s32.totalorder %s20, 0
      %p250 = por %p248, %p249
      %p251 = scmp.ne.s32.totalorder %s243, %s245
      %p252 = scmp.eq.s32.totalorder %s25, 1
      %p253 = por %p251, %p252
      %p254 = scmp.ne.s32.totalorder %s245, %s246
      %p255 = scmp.eq.s32.totalorder %s25, 0
      %p256 = por %p254, %p255
      %p257 = scmp.ne.s32.totalorder %s245, %s246
      %p258 = scmp.eq.s32.totalorder %s26, 1
      %p259 = por %p257, %p258
      %p261 = scmp.ne.s32.totalorder %s246, %s260
      %p262 = scmp.eq.s32.totalorder %s26, 0
      %p263 = por %p261, %p262
      %s264 = ssub.s32 %s20, %s27
      %p265 = scmp.eq.s32.totalorder %s264, 0
      %s267 = sadd.s32 %s266, 1
      %s268 = scalar_select %p265, %s266, %s267
      %p271 = pneg %p265
      %p272 = scmp.eq.s32.totalorder %s20, 1
      %p273 = por %p271, %p272
      %p274 = scmp.ne.s32.totalorder %s266, %s269
      %p275 = scmp.eq.s32.totalorder %s20, 0
      %p276 = por %p274, %p275
      %p277 = scmp.ne.s32.totalorder %s266, %s269
      %p278 = scmp.eq.s32.totalorder %s25, 1
      %p279 = por %p277, %p278
      %p280 = scmp.ne.s32.totalorder %s269, %s270
      %p281 = scmp.eq.s32.totalorder %s25, 0
      %p282 = por %p280, %p281
      %p283 = scmp.ne.s32.totalorder %s269, %s270
      %p284 = scmp.eq.s32.totalorder %s26, 1
      %p285 = por %p283, %p284
      %p287 = scmp.ne.s32.totalorder %s270, %s286
      %p288 = scmp.eq.s32.totalorder %s26, 0
      %p289 = por %p287, %p288
      %p290 = scmp.le.s32.totalorder 1, %s20
      %p291 = scmp.lt.s32.totalorder %s20, 3
      %p292 = pnand %p290, %p291
      %p293 = pneg %p292
      // Predicated region
      $region9: #{multihead_attention_with_prenorm.1} parent=5 // pred_check
        _
      $region10: #{multihead_attention_with_prenorm.1} parent=5 // pred_check_branch
        %295 = sbr.rel (%p292) target = $region12
      $region11: #{multihead_attention_with_prenorm.1} parent=5 // pred_region
        %s296 = ssub.s32 %s20, 1
        // Predicated region
        $region13: #{multihead_attention_with_prenorm.1} parent=11 // pred_check
          %p297 = pneg %p67
        $region14: #{multihead_attention_with_prenorm.1} parent=11 // pred_check_branch
          %299 = sbr.rel (%p297) target = $region16
        $region15: #{multihead_attention_with_prenorm.1} parent=11 // pred_region
          _
        $region16: #{multihead_attention_with_prenorm.1} parent=11 // pred_fallthru
          _
        // Predicated region
        $region17: #{multihead_attention_with_prenorm.1} parent=11 // pred_check
          %p300 = pneg %p88
        $region18: #{multihead_attention_with_prenorm.1} parent=11 // pred_check_branch
          %302 = sbr.rel (%p300) target = $region20
        $region19: #{multihead_attention_with_prenorm.1} parent=11 // pred_region
          _
        $region20: #{multihead_attention_with_prenorm.1} parent=11 // pred_fallthru
          _
        // Predicated region
        $region21: #{multihead_attention_with_prenorm.1} parent=11 // pred_check
          %p303 = pneg %p109
        $region22: #{multihead_attention_with_prenorm.1} parent=11 // pred_check_branch
          %305 = sbr.rel (%p303) target = $region24
        $region23: #{multihead_attention_with_prenorm.1} parent=11 // pred_region
          _
        $region24: #{multihead_attention_with_prenorm.1} parent=11 // pred_fallthru
          _
        // Predicated region
        $region25: #{multihead_attention_with_prenorm.1} parent=11 // pred_check
          %p306 = pneg %p130
        $region26: #{multihead_attention_with_prenorm.1} parent=11 // pred_check_branch
          %308 = sbr.rel (%p306) target = $region28
        $region27: #{multihead_attention_with_prenorm.1} parent=11 // pred_region
          _
        $region28: #{multihead_attention_with_prenorm.1} parent=11 // pred_fallthru
          _
        // Predicated region
        $region29: #{multihead_attention_with_prenorm.1} parent=11 // pred_check
          %p309 = pneg %p151
        $region30: #{multihead_attention_with_prenorm.1} parent=11 // pred_check_branch
          %311 = sbr.rel (%p309) target = $region32
        $region31: #{multihead_attention_with_prenorm.1} parent=11 // pred_region
          _
        $region32: #{multihead_attention_with_prenorm.1} parent=11 // pred_fallthru
          _
        // Predicated region
        $region33: #{multihead_attention_with_prenorm.1} parent=11 // pred_check
          %p312 = pneg %p172
        $region34: #{multihead_attention_with_prenorm.1} parent=11 // pred_check_branch
          %314 = sbr.rel (%p312) target = $region36
        $region35: #{multihead_attention_with_prenorm.1} parent=11 // pred_region
          _
        $region36: #{multihead_attention_with_prenorm.1} parent=11 // pred_fallthru
          _
        // Predicated region
        $region37: #{multihead_attention_with_prenorm.1} parent=11 // pred_check
          %p315 = pneg %p193
        $region38: #{multihead_attention_with_prenorm.1} parent=11 // pred_check_branch
          %317 = sbr.rel (%p315) target = $region40
        $region39: #{multihead_attention_with_prenorm.1} parent=11 // pred_region
          _
        $region40: #{multihead_attention_with_prenorm.1} parent=11 // pred_fallthru
          _
        // Predicated region
        $region41: #{multihead_attention_with_prenorm.1} parent=11 // pred_check
          %p318 = pneg %p214
        $region42: #{multihead_attention_with_prenorm.1} parent=11 // pred_check_branch
          %320 = sbr.rel (%p318) target = $region44
        $region43: #{multihead_attention_with_prenorm.1} parent=11 // pred_region
          _
        $region44: #{multihead_attention_with_prenorm.1} parent=11 // pred_fallthru
          _
        // Predicated region
        $region45: #{multihead_attention_with_prenorm.1} parent=11 // pred_check
          %p321 = pneg %p235
        $region46: #{multihead_attention_with_prenorm.1} parent=11 // pred_check_branch
          %323 = sbr.rel (%p321) target = $region48
        $region47: #{multihead_attention_with_prenorm.1} parent=11 // pred_region
          _
        $region48: #{multihead_attention_with_prenorm.1} parent=11 // pred_fallthru
          _
        // Predicated region
        $region49: #{multihead_attention_with_prenorm.1} parent=11 // pred_check
          %p324 = pneg %p256
        $region50: #{multihead_attention_with_prenorm.1} parent=11 // pred_check_branch
          %326 = sbr.rel (%p324) target = $region52
        $region51: #{multihead_attention_with_prenorm.1} parent=11 // pred_region
          _
        $region52: #{multihead_attention_with_prenorm.1} parent=11 // pred_fallthru
          _
      $region12: #{multihead_attention_with_prenorm.1} parent=5 // pred_fallthru
        _
      %p327 = scmp.lt.s32.totalorder %s20, 2
      // Predicated region
      $region53: #{multihead_attention_with_prenorm.1} parent=5 // pred_check
        %p328 = pneg %p327
      $region54: #{multihead_attention_with_prenorm.1} parent=5 // pred_check_branch
        %330 = sbr.rel (%p328) target = $region56
      $region55: #{multihead_attention_with_prenorm.1} parent=5 // pred_region
        // Predicated region
        $region57: #{multihead_attention_with_prenorm.1} parent=55 // pred_check
          %p331 = pneg %p40
        $region58: #{multihead_attention_with_prenorm.1} parent=55 // pred_check_branch
          %333 = sbr.rel (%p331) target = $region60
        $region59: #{multihead_attention_with_prenorm.1} parent=55 // pred_region
          %p334 = scmp.lt.s32.totalorder %s20, 1
          %s335 = scalar_select %p334, %s20, 1
          %s336 = smul.addr %s335, 8
          %s337 = scalar_lea.vmem %s0, %s336
        $region60: #{multihead_attention_with_prenorm.1} parent=55 // pred_fallthru
          _
      $region56: #{multihead_attention_with_prenorm.1} parent=5 // pred_fallthru
        _
      %p338 = scmp.le.s32.totalorder 1, %s20
      %p339 = scmp.lt.s32.totalorder %s20, 3
      %p340 = pnand %p338, %p339
      %p341 = pneg %p340
      // Predicated region
      $region61: #{multihead_attention_with_prenorm.1} parent=5 // pred_check
        _
      $region62: #{multihead_attention_with_prenorm.1} parent=5 // pred_check_branch
        %343 = sbr.rel (%p340) target = $region64
      $region63: #{multihead_attention_with_prenorm.1} parent=5 // pred_region
        %s344 = ssub.s32 %s20, 1
        %p345 = scmp.lt.s32.totalorder %s25, 1
        %s346 = scalar_select %p345, %s25, 1
        %s347 = smul.addr %s346, 8
        %s348 = scalar_lea.vmem %s0, %s347
        %p349 = pneg %p46
        %p350 = pneg %p43
        %p351 = pneg %p67
        %p352 = pneg %p64
        %p353 = pneg %p88
        %p354 = pneg %p85
        %p355 = pneg %p109
        %p356 = pneg %p106
        %p357 = pneg %p130
        %p358 = pneg %p127
        %p359 = pneg %p151
        %p360 = pneg %p148
        %p361 = pneg %p172
        %p362 = pneg %p169
        %p363 = pneg %p193
        %p364 = pneg %p190
        %p365 = pneg %p214
        %p366 = pneg %p211
        %p367 = pneg %p235
        %p368 = pneg %p232
        %p369 = pneg %p256
        %p370 = pneg %p253
        %p371 = pneg %p282
        %p372 = pneg %p279
        %s373 = sand.u32 %s269, 1
        %s374 = scalar_lea.sflag [#allocation3], %s373
        %s375 = sand.u32 %s269, 1
        %s376 = smul.addr %s375, 8
        %s377 = scalar_lea.vmem [#allocation2], %s376
        %p378 = scmp.lt.s32.totalorder %s25, 1
        %s379 = scalar_select %p378, %s25, 1
        %s380 = smul.addr %s379, 8
        %s381 = scalar_lea.vmem %s0, %s380
        %v382 = vld [vmem:[%s381] sm:$0xff]
        %vm383 = vcmask 261120
        %v384 = vsel %vm383, %v382, 0.0
        %385 = vadd.xlane.f32.xlu0 %v384
        %v386 = vpop.xlane.xlu0 %385
        %v387 = vrcp.pop 32.0
        %v388 = vmul.f32 %v386, %v387
        %v389 = vsub.f32 %v382, %v388
        %v390 = vmul.f32 %v389, %v389
        %v391 = vsel %vm383, %v390, 0.0
        %392 = vadd.xlane.f32.xlu0 %v391
        %v393 = vpop.xlane.xlu0 %392
        %v394 = vmul.f32 %v393, %v387
        %v395 = vadd.f32 %v394, 1e-05
        %v396 = vrsqrt.pop %v395
        %v397 = vmul.f32 %v389, %v396
        %v398 = vld [vmem:[%s1] sm:$0x1]
        %v400 = vlaneseq
        %v401 = vshrl.u32 %v400, 7
        %v402 = vsub.s32 0, %v401
        %v403 = vrot.slane %v398, %v402
        %v405 = vmul.f32 %v397, %v403
        %v406 = vld [vmem:[%s2] sm:$0x1]
        %v408 = vlaneseq
        %v409 = vshrl.u32 %v408, 7
        %v410 = vsub.s32 0, %v409
        %v411 = vrot.slane %v406, %v410
        %v413 = vadd.f32 %v405, %v411
        %v414 = vld [vmem:[%s3] sm:$0xff]
        %v415 = vld [vmem:[%s3 + $0x8] sm:$0xff]
        %v416 = vld [vmem:[%s3 + $0x10] sm:$0xff]
        %v417 = vld [vmem:[%s3 + $0x18] sm:$0xff]
        %v418 = vld [vmem:[%s6] sm:$0x1]
        %v420 = vlaneseq
        %v421 = vshrl.u32 %v420, 7
        %v422 = vsub.s32 0, %v421
        %v423 = vrot.slane %v418, %v422
        %v426 = vsel %vm383, %v413, 0
        %428 = vmatprep.subr.mxu0 0.0
        %429 = vmatpush1.msra.mxu0 0.0
        %430 = vmatprep.subr.mxu0 0.0
        %431 = vmatpush1.msra.mxu0 0.0
        %432 = vmatprep.subr.mxu0 0.0
        %433 = vmatpush1.msra.mxu0 0.0
        %434 = vmatprep.subr.mxu0 0.0
        %435 = vmatpush1.msra.mxu0 0.0
        %436 = vmatprep.subr.mxu0 0.0
        %437 = vmatpush1.msra.mxu0 0.0
        %438 = vmatprep.subr.mxu0 0.0
        %439 = vmatpush1.msra.mxu0 0.0
        %440 = vmatprep.subr.mxu0 0.0
        %441 = vmatpush1.msra.mxu0 0.0
        %442 = vmatprep.subr.mxu0 0.0
        %443 = vmatpush1.msra.mxu0 0.0
        %444 = vmatprep.subr.mxu0 0.0
        %445 = vmatpush1.msra.mxu0 0.0
        %446 = vmatprep.subr.mxu0 0.0
        %447 = vmatpush1.msra.mxu0 0.0
        %448 = vmatprep.subr.mxu0 0.0
        %449 = vmatpush1.msra.mxu0 0.0
        %450 = vmatprep.subr.mxu0 0.0
        %451 = vmatpush1.msra.mxu0 0.0
        %452 = vmatprep.subr.mxu0 0.0
        %453 = vmatpush1.msra.mxu0 %v417
        %454 = vmatprep.subr.mxu0 0.0
        %455 = vmatpush1.msra.mxu0 %v416
        %456 = vmatprep.subr.mxu0 0.0
        %457 = vmatpush1.msra.mxu0 %v415
        %458 = vmatprep.subr.mxu0 0.0
        %459 = vmatpush1.msra.mxu0 %v414
        %460 = vmatprep.subr.mxu0 0.0
        %461 = vmatpush2.msra.mxu0 0.0
        %462 = vmatprep.subr.mxu0 0.0
        %463 = vmatpush2.msra.mxu0 0.0
        %464 = vmatprep.subr.mxu0 0.0
        %465 = vmatpush2.msra.mxu0 0.0
        %466 = vmatprep.subr.mxu0 0.0
        %467 = vmatpush2.msra.mxu0 0.0
        %468 = vmatprep.subr.mxu0 0.0
        %469 = vmatpush2.msra.mxu0 0.0
        %470 = vmatprep.subr.mxu0 0.0
        %471 = vmatpush2.msra.mxu0 0.0
        %472 = vmatprep.subr.mxu0 0.0
        %473 = vmatpush2.msra.mxu0 0.0
        %474 = vmatprep.subr.mxu0 0.0
        %475 = vmatpush2.msra.mxu0 0.0
        %476 = vmatprep.subr.mxu0 0.0
        %477 = vmatpush2.msra.mxu0 0.0
        %478 = vmatprep.subr.mxu0 0.0
        %479 = vmatpush2.msra.mxu0 0.0
        %480 = vmatprep.subr.mxu0 0.0
        %481 = vmatpush2.msra.mxu0 0.0
        %482 = vmatprep.subr.mxu0 0.0
        %483 = vmatpush2.msra.mxu0 0.0
        %484 = vmatprep.subr.mxu0 0.0
        %485 = vmatpush2.msra.mxu0 0.0
        %486 = vmatprep.subr.mxu0 0.0
        %487 = vmatpush2.msra.mxu0 0.0
        %488 = vmatprep.subr.mxu0 0.0
        %489 = vmatpush2.msra.mxu0 0.0
        %490 = vmatprep.subr.mxu0 0.0
        %491 = vmatpush2.msra.mxu0 0.0
        %492 = vmatprep.mubr.f32.mxu0 0.0
        %493 = vmatmul.mubr.f32.gmra.mxu0 %v426
        %v494 = vpop.f32.mrf.mxu0
        %v495 = vadd.f32 %v423, %v494
        %v496 = vpop.f32.mrf.mxu0
        %497 = vdwg.mxu0
        %v498 = vld [vmem:[%s4] sm:$0xff]
        %v499 = vld [vmem:[%s4 + $0x8] sm:$0xff]
        %v500 = vld [vmem:[%s4 + $0x10] sm:$0xff]
        %v501 = vld [vmem:[%s4 + $0x18] sm:$0xff]
        %v502 = vld [vmem:[%s7] sm:$0x1]
        %v504 = vlaneseq
        %v505 = vshrl.u32 %v504, 7
        %v506 = vsub.s32 0, %v505
        %v507 = vrot.slane %v502, %v506
        %509 = vmatprep.subr.mxu0 0.0
        %510 = vmatpush1.msra.mxu0 0.0
        %511 = vmatprep.subr.mxu0 0.0
        %512 = vmatpush1.msra.mxu0 0.0
        %513 = vmatprep.subr.mxu0 0.0
        %514 = vmatpush1.msra.mxu0 0.0
        %515 = vmatprep.subr.mxu0 0.0
        %516 = vmatpush1.msra.mxu0 0.0
        %517 = vmatprep.subr.mxu0 0.0
        %518 = vmatpush1.msra.mxu0 0.0
        %519 = vmatprep.subr.mxu0 0.0
        %520 = vmatpush1.msra.mxu0 0.0
        %521 = vmatprep.subr.mxu0 0.0
        %522 = vmatpush1.msra.mxu0 0.0
        %523 = vmatprep.subr.mxu0 0.0
        %524 = vmatpush1.msra.mxu0 0.0
        %525 = vmatprep.subr.mxu0 0.0
        %526 = vmatpush1.msra.mxu0 0.0
        %527 = vmatprep.subr.mxu0 0.0
        %528 = vmatpush1.msra.mxu0 0.0
        %529 = vmatprep.subr.mxu0 0.0
        %530 = vmatpush1.msra.mxu0 0.0
        %531 = vmatprep.subr.mxu0 0.0
        %532 = vmatpush1.msra.mxu0 0.0
        %533 = vmatprep.subr.mxu0 0.0
        %534 = vmatpush1.msra.mxu0 %v501
        %535 = vmatprep.subr.mxu0 0.0
        %536 = vmatpush1.msra.mxu0 %v500
        %537 = vmatprep.subr.mxu0 0.0
        %538 = vmatpush1.msra.mxu0 %v499
        %539 = vmatprep.subr.mxu0 0.0
        %540 = vmatpush1.msra.mxu0 %v498
        %541 = vmatprep.subr.mxu0 0.0
        %542 = vmatpush2.msra.mxu0 0.0
        %543 = vmatprep.subr.mxu0 0.0
        %544 = vmatpush2.msra.mxu0 0.0
        %545 = vmatprep.subr.mxu0 0.0
        %546 = vmatpush2.msra.mxu0 0.0
        %547 = vmatprep.subr.mxu0 0.0
        %548 = vmatpush2.msra.mxu0 0.0
        %549 = vmatprep.subr.mxu0 0.0
        %550 = vmatpush2.msra.mxu0 0.0
        %551 = vmatprep.subr.mxu0 0.0
        %552 = vmatpush2.msra.mxu0 0.0
        %553 = vmatprep.subr.mxu0 0.0
        %554 = vmatpush2.msra.mxu0 0.0
        %555 = vmatprep.subr.mxu0 0.0
        %556 = vmatpush2.msra.mxu0 0.0
        %557 = vmatprep.subr.mxu0 0.0
        %558 = vmatpush2.msra.mxu0 0.0
        %559 = vmatprep.subr.mxu0 0.0
        %560 = vmatpush2.msra.mxu0 0.0
        %561 = vmatprep.subr.mxu0 0.0
        %562 = vmatpush2.msra.mxu0 0.0
        %563 = vmatprep.subr.mxu0 0.0
        %564 = vmatpush2.msra.mxu0 0.0
        %565 = vmatprep.subr.mxu0 0.0
        %566 = vmatpush2.msra.mxu0 0.0
        %567 = vmatprep.subr.mxu0 0.0
        %568 = vmatpush2.msra.mxu0 0.0
        %569 = vmatprep.subr.mxu0 0.0
        %570 = vmatpush2.msra.mxu0 0.0
        %571 = vmatprep.subr.mxu0 0.0
        %572 = vmatpush2.msra.mxu0 0.0
        %573 = vmatprep.mubr.f32.mxu0 0.0
        %574 = vmatmul.mubr.f32.gmra.mxu0 %v426
        %v575 = vpop.f32.mrf.mxu0
        %v576 = vadd.f32 %v507, %v575
        %v577 = vpop.f32.mrf.mxu0
        %578 = vdwg.mxu0
        %v579 = vld [vmem:[%s5] sm:$0xff]
        %v580 = vld [vmem:[%s5 + $0x8] sm:$0xff]
        %v581 = vld [vmem:[%s5 + $0x10] sm:$0xff]
        %v582 = vld [vmem:[%s5 + $0x18] sm:$0xff]
        %v583 = vld [vmem:[%s8] sm:$0x1]
        %v585 = vlaneseq
        %v586 = vshrl.u32 %v585, 7
        %v587 = vsub.s32 0, %v586
        %v588 = vrot.slane %v583, %v587
        %590 = vmatprep.subr.mxu0 0.0
        %591 = vmatpush1.msra.mxu0 0.0
        %592 = vmatprep.subr.mxu0 0.0
        %593 = vmatpush1.msra.mxu0 0.0
        %594 = vmatprep.subr.mxu0 0.0
        %595 = vmatpush1.msra.mxu0 0.0
        %596 = vmatprep.subr.mxu0 0.0
        %597 = vmatpush1.msra.mxu0 0.0
        %598 = vmatprep.subr.mxu0 0.0
        %599 = vmatpush1.msra.mxu0 0.0
        %600 = vmatprep.subr.mxu0 0.0
        %601 = vmatpush1.msra.mxu0 0.0
        %602 = vmatprep.subr.mxu0 0.0
        %603 = vmatpush1.msra.mxu0 0.0
        %604 = vmatprep.subr.mxu0 0.0
        %605 = vmatpush1.msra.mxu0 0.0
        %606 = vmatprep.subr.mxu0 0.0
        %607 = vmatpush1.msra.mxu0 0.0
        %608 = vmatprep.subr.mxu0 0.0
        %609 = vmatpush1.msra.mxu0 0.0
        %610 = vmatprep.subr.mxu0 0.0
        %611 = vmatpush1.msra.mxu0 0.0
        %612 = vmatprep.subr.mxu0 0.0
        %613 = vmatpush1.msra.mxu0 0.0
        %614 = vmatprep.subr.mxu0 0.0
        %615 = vmatpush1.msra.mxu0 %v582
        %616 = vmatprep.subr.mxu0 0.0
        %617 = vmatpush1.msra.mxu0 %v581
        %618 = vmatprep.subr.mxu0 0.0
        %619 = vmatpush1.msra.mxu0 %v580
        %620 = vmatprep.subr.mxu0 0.0
        %621 = vmatpush1.msra.mxu0 %v579
        %622 = vmatprep.subr.mxu0 0.0
        %623 = vmatpush2.msra.mxu0 0.0
        %624 = vmatprep.subr.mxu0 0.0
        %625 = vmatpush2.msra.mxu0 0.0
        %626 = vmatprep.subr.mxu0 0.0
        %627 = vmatpush2.msra.mxu0 0.0
        %628 = vmatprep.subr.mxu0 0.0
        %629 = vmatpush2.msra.mxu0 0.0
        %630 = vmatprep.subr.mxu0 0.0
        %631 = vmatpush2.msra.mxu0 0.0
        %632 = vmatprep.subr.mxu0 0.0
        %633 = vmatpush2.msra.mxu0 0.0
        %634 = vmatprep.subr.mxu0 0.0
        %635 = vmatpush2.msra.mxu0 0.0
        %636 = vmatprep.subr.mxu0 0.0
        %637 = vmatpush2.msra.mxu0 0.0
        %638 = vmatprep.subr.mxu0 0.0
        %639 = vmatpush2.msra.mxu0 0.0
        %640 = vmatprep.subr.mxu0 0.0
        %641 = vmatpush2.msra.mxu0 0.0
        %642 = vmatprep.subr.mxu0 0.0
        %643 = vmatpush2.msra.mxu0 0.0
        %644 = vmatprep.subr.mxu0 0.0
        %645 = vmatpush2.msra.mxu0 0.0
        %646 = vmatprep.subr.mxu0 0.0
        %647 = vmatpush2.msra.mxu0 0.0
        %648 = vmatprep.subr.mxu0 0.0
        %649 = vmatpush2.msra.mxu0 0.0
        %650 = vmatprep.subr.mxu0 0.0
        %651 = vmatpush2.msra.mxu0 0.0
        %652 = vmatprep.subr.mxu0 0.0
        %653 = vmatpush2.msra.mxu0 0.0
        %654 = vmatprep.mubr.f32.mxu0 0.0
        %655 = vmatmul.mubr.f32.gmra.mxu0 %v426
        %v656 = vpop.f32.mrf.mxu0
        %v657 = vadd.f32 %v588, %v656
        %v658 = vpop.f32.mrf.mxu0
        %659 = vdwg.mxu0
        %vm660 = vcmask 31744
        %v662 = vsel %vm660, %v495, 0
        %v665 = vsel %vm660, %v576, 0
        %667 = vmatprep.subr.mxu0 0.0
        %668 = vmatpush1.xpose.msra.mxu0 0.0
        %669 = vmatprep.subr.mxu0 0.0
        %670 = vmatpush1.xpose.msra.mxu0 0.0
        %671 = vmatprep.subr.mxu0 0.0
        %672 = vmatpush1.xpose.msra.mxu0 0.0
        %673 = vmatprep.subr.mxu0 0.0
        %674 = vmatpush1.xpose.msra.mxu0 0.0
        %675 = vmatprep.subr.mxu0 0.0
        %676 = vmatpush1.xpose.msra.mxu0 0.0
        %677 = vmatprep.subr.mxu0 0.0
        %678 = vmatpush1.xpose.msra.mxu0 0.0
        %679 = vmatprep.subr.mxu0 0.0
        %680 = vmatpush1.xpose.msra.mxu0 0.0
        %681 = vmatprep.subr.mxu0 0.0
        %682 = vmatpush1.xpose.msra.mxu0 0.0
        %683 = vmatprep.subr.mxu0 0.0
        %684 = vmatpush1.xpose.msra.mxu0 0.0
        %685 = vmatprep.subr.mxu0 0.0
        %686 = vmatpush1.xpose.msra.mxu0 0.0
        %687 = vmatprep.subr.mxu0 0.0
        %688 = vmatpush1.xpose.msra.mxu0 0.0
        %689 = vmatprep.subr.mxu0 0.0
        %690 = vmatpush1.xpose.msra.mxu0 0.0
        %691 = vmatprep.subr.mxu0 0.0
        %692 = vmatpush1.xpose.msra.mxu0 0.0
        %693 = vmatprep.subr.mxu0 0.0
        %694 = vmatpush1.xpose.msra.mxu0 0.0
        %695 = vmatprep.subr.mxu0 0.0
        %696 = vmatpush1.xpose.msra.mxu0 0.0
        %697 = vmatprep.subr.mxu0 0.0
        %698 = vmatpush1.xpose.msra.mxu0 %v665
        %699 = vmatprep.subr.mxu0 0.0
        %700 = vmatpush2.xpose.msra.mxu0 0.0
        %701 = vmatprep.subr.mxu0 0.0
        %702 = vmatpush2.xpose.msra.mxu0 0.0
        %703 = vmatprep.subr.mxu0 0.0
        %704 = vmatpush2.xpose.msra.mxu0 0.0
        %705 = vmatprep.subr.mxu0 0.0
        %706 = vmatpush2.xpose.msra.mxu0 0.0
        %707 = vmatprep.subr.mxu0 0.0
        %708 = vmatpush2.xpose.msra.mxu0 0.0
        %709 = vmatprep.subr.mxu0 0.0
        %710 = vmatpush2.xpose.msra.mxu0 0.0
        %711 = vmatprep.subr.mxu0 0.0
        %712 = vmatpush2.xpose.msra.mxu0 0.0
        %713 = vmatprep.subr.mxu0 0.0
        %714 = vmatpush2.xpose.msra.mxu0 0.0
        %715 = vmatprep.subr.mxu0 0.0
        %716 = vmatpush2.xpose.msra.mxu0 0.0
        %717 = vmatprep.subr.mxu0 0.0
        %718 = vmatpush2.xpose.msra.mxu0 0.0
        %719 = vmatprep.subr.mxu0 0.0
        %720 = vmatpush2.xpose.msra.mxu0 0.0
        %721 = vmatprep.subr.mxu0 0.0
        %722 = vmatpush2.xpose.msra.mxu0 0.0
        %723 = vmatprep.subr.mxu0 0.0
        %724 = vmatpush2.xpose.msra.mxu0 0.0
        %725 = vmatprep.subr.mxu0 0.0
        %726 = vmatpush2.xpose.msra.mxu0 0.0
        %727 = vmatprep.subr.mxu0 0.0
        %728 = vmatpush2.xpose.msra.mxu0 0.0
        %729 = vmatprep.subr.mxu0 0.0
        %730 = vmatpush2.xpose.msra.mxu0 0.0
        %731 = vmatprep.mubr.f32.mxu0 0.0
        %732 = vmatmul.mubr.f32.gmra.mxu0 %v662
        %v733 = vpop.f32.mrf.mxu0
        %v734 = vadd.f32 0.0, %v733
        %v735 = vpop.f32.mrf.mxu0
        %736 = vdwg.mxu0
        %v737 = vmul.f32 %v734, 0.5
        %vm738 = vcmask 64512
        %v739 = vsel %vm738, %v737, -inf
        %740 = vmax.xlane.f32.xlu0 %v739
        %v741 = vpop.xlane.xlu0 %740
        %v742 = vsub.f32 %v737, %v741
        %v743 = vmul.f32 %v742, 1.442695
        %v744 = vpow.pop %v743
        %v745 = vsel %vm738, %v744, 0.0
        %746 = vadd.xlane.f32.xlu0 %v745
        %v747 = vpop.xlane.xlu0 %746
        %v748 = vrcp.pop %v747
        %v749 = vmul.f32 %v744, %v748
        %v751 = vsel %vm738, %v749, 0
        %753 = vmatprep.subr.mxu0 0.0
        %754 = vmatpush1.msra.mxu0 0.0
        %755 = vmatprep.subr.mxu0 0.0
        %756 = vmatpush1.msra.mxu0 0.0
        %757 = vmatprep.subr.mxu0 0.0
        %758 = vmatpush1.msra.mxu0 0.0
        %759 = vmatprep.subr.mxu0 0.0
        %760 = vmatpush1.msra.mxu0 0.0
        %761 = vmatprep.subr.mxu0 0.0
        %762 = vmatpush1.msra.mxu0 0.0
        %763 = vmatprep.subr.mxu0 0.0
        %764 = vmatpush1.msra.mxu0 0.0
        %765 = vmatprep.subr.mxu0 0.0
        %766 = vmatpush1.msra.mxu0 0.0
        %767 = vmatprep.subr.mxu0 0.0
        %768 = vmatpush1.msra.mxu0 0.0
        %769 = vmatprep.subr.mxu0 0.0
        %770 = vmatpush1.msra.mxu0 0.0
        %771 = vmatprep.subr.mxu0 0.0
        %772 = vmatpush1.msra.mxu0 0.0
        %773 = vmatprep.subr.mxu0 0.0
        %774 = vmatpush1.msra.mxu0 0.0
        %775 = vmatprep.subr.mxu0 0.0
        %776 = vmatpush1.msra.mxu0 0.0
        %777 = vmatprep.subr.mxu0 0.0
        %778 = vmatpush1.msra.mxu0 0.0
        %779 = vmatprep.subr.mxu0 0.0
        %780 = vmatpush1.msra.mxu0 0.0
        %781 = vmatprep.subr.mxu0 0.0
        %782 = vmatpush1.msra.mxu0 0.0
        %783 = vmatprep.subr.mxu0 0.0
        %784 = vmatpush1.msra.mxu0 %v657
        %785 = vmatprep.subr.mxu0 0.0
        %786 = vmatpush2.msra.mxu0 0.0
        %787 = vmatprep.subr.mxu0 0.0
        %788 = vmatpush2.msra.mxu0 0.0
        %789 = vmatprep.subr.mxu0 0.0
        %790 = vmatpush2.msra.mxu0 0.0
        %791 = vmatprep.subr.mxu0 0.0
        %792 = vmatpush2.msra.mxu0 0.0
        %793 = vmatprep.subr.mxu0 0.0
        %794 = vmatpush2.msra.mxu0 0.0
        %795 = vmatprep.subr.mxu0 0.0
        %796 = vmatpush2.msra.mxu0 0.0
        %797 = vmatprep.subr.mxu0 0.0
        %798 = vmatpush2.msra.mxu0 0.0
        %799 = vmatprep.subr.mxu0 0.0
        %800 = vmatpush2.msra.mxu0 0.0
        %801 = vmatprep.subr.mxu0 0.0
        %802 = vmatpush2.msra.mxu0 0.0
        %803 = vmatprep.subr.mxu0 0.0
        %804 = vmatpush2.msra.mxu0 0.0
        %805 = vmatprep.subr.mxu0 0.0
        %806 = vmatpush2.msra.mxu0 0.0
        %807 = vmatprep.subr.mxu0 0.0
        %808 = vmatpush2.msra.mxu0 0.0
        %809 = vmatprep.subr.mxu0 0.0
        %810 = vmatpush2.msra.mxu0 0.0
        %811 = vmatprep.subr.mxu0 0.0
        %812 = vmatpush2.msra.mxu0 0.0
        %813 = vmatprep.subr.mxu0 0.0
        %814 = vmatpush2.msra.mxu0 0.0
        %815 = vmatprep.subr.mxu0 0.0
        %816 = vmatpush2.msra.mxu0 0.0
        %817 = vmatprep.mubr.f32.mxu0 0.0
        %818 = vmatmul.mubr.f32.gmra.mxu0 %v751
        %v819 = vpop.f32.mrf.mxu0
        %v820 = vadd.f32 0.0, %v819
        %v821 = vpop.f32.mrf.mxu0
        %822 = vdwg.mxu0
        %823 = vrot.lane.b32.xlu0 %v495, 124
        %v824 = vpop.permute.xlu0 %823
        %825 = vrot.lane.b32.xlu0 %v576, 124
        %v826 = vpop.permute.xlu0 %825
        %v827 = vsel %vm660, %v824, 0
        %v829 = vsel %vm660, %v826, 0
        %831 = vmatprep.subr.mxu0 0.0
        %832 = vmatpush1.xpose.msra.mxu0 0.0
        %833 = vmatprep.subr.mxu0 0.0
        %834 = vmatpush1.xpose.msra.mxu0 0.0
        %835 = vmatprep.subr.mxu0 0.0
        %836 = vmatpush1.xpose.msra.mxu0 0.0
        %837 = vmatprep.subr.mxu0 0.0
        %838 = vmatpush1.xpose.msra.mxu0 0.0
        %839 = vmatprep.subr.mxu0 0.0
        %840 = vmatpush1.xpose.msra.mxu0 0.0
        %841 = vmatprep.subr.mxu0 0.0
        %842 = vmatpush1.xpose.msra.mxu0 0.0
        %843 = vmatprep.subr.mxu0 0.0
        %844 = vmatpush1.xpose.msra.mxu0 0.0
        %845 = vmatprep.subr.mxu0 0.0
        %846 = vmatpush1.xpose.msra.mxu0 0.0
        %847 = vmatprep.subr.mxu0 0.0
        %848 = vmatpush1.xpose.msra.mxu0 0.0
        %849 = vmatprep.subr.mxu0 0.0
        %850 = vmatpush1.xpose.msra.mxu0 0.0
        %851 = vmatprep.subr.mxu0 0.0
        %852 = vmatpush1.xpose.msra.mxu0 0.0
        %853 = vmatprep.subr.mxu0 0.0
        %854 = vmatpush1.xpose.msra.mxu0 0.0
        %855 = vmatprep.subr.mxu0 0.0
        %856 = vmatpush1.xpose.msra.mxu0 0.0
        %857 = vmatprep.subr.mxu0 0.0
        %858 = vmatpush1.xpose.msra.mxu0 0.0
        %859 = vmatprep.subr.mxu0 0.0
        %860 = vmatpush1.xpose.msra.mxu0 0.0
        %861 = vmatprep.subr.mxu0 0.0
        %862 = vmatpush1.xpose.msra.mxu0 %v829
        %863 = vmatprep.subr.mxu0 0.0
        %864 = vmatpush2.xpose.msra.mxu0 0.0
        %865 = vmatprep.subr.mxu0 0.0
        %866 = vmatpush2.xpose.msra.mxu0 0.0
        %867 = vmatprep.subr.mxu0 0.0
        %868 = vmatpush2.xpose.msra.mxu0 0.0
        %869 = vmatprep.subr.mxu0 0.0
        %870 = vmatpush2.xpose.msra.mxu0 0.0
        %871 = vmatprep.subr.mxu0 0.0
        %872 = vmatpush2.xpose.msra.mxu0 0.0
        %873 = vmatprep.subr.mxu0 0.0
        %874 = vmatpush2.xpose.msra.mxu0 0.0
        %875 = vmatprep.subr.mxu0 0.0
        %876 = vmatpush2.xpose.msra.mxu0 0.0
        %877 = vmatprep.subr.mxu0 0.0
        %878 = vmatpush2.xpose.msra.mxu0 0.0
        %879 = vmatprep.subr.mxu0 0.0
        %880 = vmatpush2.xpose.msra.mxu0 0.0
        %881 = vmatprep.subr.mxu0 0.0
        %882 = vmatpush2.xpose.msra.mxu0 0.0
        %883 = vmatprep.subr.mxu0 0.0
        %884 = vmatpush2.xpose.msra.mxu0 0.0
        %885 = vmatprep.subr.mxu0 0.0
        %886 = vmatpush2.xpose.msra.mxu0 0.0
        %887 = vmatprep.subr.mxu0 0.0
        %888 = vmatpush2.xpose.msra.mxu0 0.0
        %889 = vmatprep.subr.mxu0 0.0
        %890 = vmatpush2.xpose.msra.mxu0 0.0
        %891 = vmatprep.subr.mxu0 0.0
        %892 = vmatpush2.xpose.msra.mxu0 0.0
        %893 = vmatprep.subr.mxu0 0.0
        %894 = vmatpush2.xpose.msra.mxu0 0.0
        %895 = vmatprep.mubr.f32.mxu0 0.0
        %896 = vmatmul.mubr.f32.gmra.mxu0 %v827
        %v897 = vpop.f32.mrf.mxu0
        %v898 = vadd.f32 0.0, %v897
        %v899 = vpop.f32.mrf.mxu0
        %900 = vdwg.mxu0
        %v901 = vmul.f32 %v898, 0.5
        %v902 = vsel %vm738, %v901, -inf
        %903 = vmax.xlane.f32.xlu0 %v902
        %v904 = vpop.xlane.xlu0 %903
        %v905 = vsub.f32 %v901, %v904
        %v906 = vmul.f32 %v905, 1.442695
        %v907 = vpow.pop %v906
        %v908 = vsel %vm738, %v907, 0.0
        %909 = vadd.xlane.f32.xlu0 %v908
        %v910 = vpop.xlane.xlu0 %909
        %v911 = vrcp.pop %v910
        %v912 = vmul.f32 %v907, %v911
        %914 = vrot.lane.b32.xlu0 %v657, 124
        %v915 = vpop.permute.xlu0 %914
        %v918 = vsel %vm738, %v912, 0
        %920 = vmatprep.subr.mxu0 0.0
        %921 = vmatpush1.msra.mxu0 0.0
        %922 = vmatprep.subr.mxu0 0.0
        %923 = vmatpush1.msra.mxu0 0.0
        %924 = vmatprep.subr.mxu0 0.0
        %925 = vmatpush1.msra.mxu0 0.0
        %926 = vmatprep.subr.mxu0 0.0
        %927 = vmatpush1.msra.mxu0 0.0
        %928 = vmatprep.subr.mxu0 0.0
        %929 = vmatpush1.msra.mxu0 0.0
        %930 = vmatprep.subr.mxu0 0.0
        %931 = vmatpush1.msra.mxu0 0.0
        %932 = vmatprep.subr.mxu0 0.0
        %933 = vmatpush1.msra.mxu0 0.0
        %934 = vmatprep.subr.mxu0 0.0
        %935 = vmatpush1.msra.mxu0 0.0
        %936 = vmatprep.subr.mxu0 0.0
        %937 = vmatpush1.msra.mxu0 0.0
        %938 = vmatprep.subr.mxu0 0.0
        %939 = vmatpush1.msra.mxu0 0.0
        %940 = vmatprep.subr.mxu0 0.0
        %941 = vmatpush1.msra.mxu0 0.0
        %942 = vmatprep.subr.mxu0 0.0
        %943 = vmatpush1.msra.mxu0 0.0
        %944 = vmatprep.subr.mxu0 0.0
        %945 = vmatpush1.msra.mxu0 0.0
        %946 = vmatprep.subr.mxu0 0.0
        %947 = vmatpush1.msra.mxu0 0.0
        %948 = vmatprep.subr.mxu0 0.0
        %949 = vmatpush1.msra.mxu0 0.0
        %950 = vmatprep.subr.mxu0 0.0
        %951 = vmatpush1.msra.mxu0 %v915
        %952 = vmatprep.subr.mxu0 0.0
        %953 = vmatpush2.msra.mxu0 0.0
        %954 = vmatprep.subr.mxu0 0.0
        %955 = vmatpush2.msra.mxu0 0.0
        %956 = vmatprep.subr.mxu0 0.0
        %957 = vmatpush2.msra.mxu0 0.0
        %958 = vmatprep.subr.mxu0 0.0
        %959 = vmatpush2.msra.mxu0 0.0
        %960 = vmatprep.subr.mxu0 0.0
        %961 = vmatpush2.msra.mxu0 0.0
        %962 = vmatprep.subr.mxu0 0.0
        %963 = vmatpush2.msra.mxu0 0.0
        %964 = vmatprep.subr.mxu0 0.0
        %965 = vmatpush2.msra.mxu0 0.0
        %966 = vmatprep.subr.mxu0 0.0
        %967 = vmatpush2.msra.mxu0 0.0
        %968 = vmatprep.subr.mxu0 0.0
        %969 = vmatpush2.msra.mxu0 0.0
        %970 = vmatprep.subr.mxu0 0.0
        %971 = vmatpush2.msra.mxu0 0.0
        %972 = vmatprep.subr.mxu0 0.0
        %973 = vmatpush2.msra.mxu0 0.0
        %974 = vmatprep.subr.mxu0 0.0
        %975 = vmatpush2.msra.mxu0 0.0
        %976 = vmatprep.subr.mxu0 0.0
        %977 = vmatpush2.msra.mxu0 0.0
        %978 = vmatprep.subr.mxu0 0.0
        %979 = vmatpush2.msra.mxu0 0.0
        %980 = vmatprep.subr.mxu0 0.0
        %981 = vmatpush2.msra.mxu0 0.0
        %982 = vmatprep.subr.mxu0 0.0
        %983 = vmatpush2.msra.mxu0 0.0
        %984 = vmatprep.mubr.f32.mxu0 0.0
        %985 = vmatmul.mubr.f32.gmra.mxu0 %v918
        %v986 = vpop.f32.mrf.mxu0
        %v987 = vadd.f32 0.0, %v986
        %v988 = vpop.f32.mrf.mxu0
        %989 = vdwg.mxu0
        %990 = vrot.lane.b32.xlu0 %v495, 120
        %v991 = vpop.permute.xlu0 %990
        %992 = vrot.lane.b32.xlu0 %v576, 120
        %v993 = vpop.permute.xlu0 %992
        %v994 = vsel %vm660, %v991, 0
        %v996 = vsel %vm660, %v993, 0
        %998 = vmatprep.subr.mxu0 0.0
        %999 = vmatpush1.xpose.msra.mxu0 0.0
        %1000 = vmatprep.subr.mxu0 0.0
        %1001 = vmatpush1.xpose.msra.mxu0 0.0
        %1002 = vmatprep.subr.mxu0 0.0
        %1003 = vmatpush1.xpose.msra.mxu0 0.0
        %1004 = vmatprep.subr.mxu0 0.0
        %1005 = vmatpush1.xpose.msra.mxu0 0.0
        %1006 = vmatprep.subr.mxu0 0.0
        %1007 = vmatpush1.xpose.msra.mxu0 0.0
        %1008 = vmatprep.subr.mxu0 0.0
        %1009 = vmatpush1.xpose.msra.mxu0 0.0
        %1010 = vmatprep.subr.mxu0 0.0
        %1011 = vmatpush1.xpose.msra.mxu0 0.0
        %1012 = vmatprep.subr.mxu0 0.0
        %1013 = vmatpush1.xpose.msra.mxu0 0.0
        %1014 = vmatprep.subr.mxu0 0.0
        %1015 = vmatpush1.xpose.msra.mxu0 0.0
        %1016 = vmatprep.subr.mxu0 0.0
        %1017 = vmatpush1.xpose.msra.mxu0 0.0
        %1018 = vmatprep.subr.mxu0 0.0
        %1019 = vmatpush1.xpose.msra.mxu0 0.0
        %1020 = vmatprep.subr.mxu0 0.0
        %1021 = vmatpush1.xpose.msra.mxu0 0.0
        %1022 = vmatprep.subr.mxu0 0.0
        %1023 = vmatpush1.xpose.msra.mxu0 0.0
        %1024 = vmatprep.subr.mxu0 0.0
        %1025 = vmatpush1.xpose.msra.mxu0 0.0
        %1026 = vmatprep.subr.mxu0 0.0
        %1027 = vmatpush1.xpose.msra.mxu0 0.0
        %1028 = vmatprep.subr.mxu0 0.0
        %1029 = vmatpush1.xpose.msra.mxu0 %v996
        %1030 = vmatprep.subr.mxu0 0.0
        %1031 = vmatpush2.xpose.msra.mxu0 0.0
        %1032 = vmatprep.subr.mxu0 0.0
        %1033 = vmatpush2.xpose.msra.mxu0 0.0
        %1034 = vmatprep.subr.mxu0 0.0
        %1035 = vmatpush2.xpose.msra.mxu0 0.0
        %1036 = vmatprep.subr.mxu0 0.0
        %1037 = vmatpush2.xpose.msra.mxu0 0.0
        %1038 = vmatprep.subr.mxu0 0.0
        %1039 = vmatpush2.xpose.msra.mxu0 0.0
        %1040 = vmatprep.subr.mxu0 0.0
        %1041 = vmatpush2.xpose.msra.mxu0 0.0
        %1042 = vmatprep.subr.mxu0 0.0
        %1043 = vmatpush2.xpose.msra.mxu0 0.0
        %1044 = vmatprep.subr.mxu0 0.0
        %1045 = vmatpush2.xpose.msra.mxu0 0.0
        %1046 = vmatprep.subr.mxu0 0.0
        %1047 = vmatpush2.xpose.msra.mxu0 0.0
        %1048 = vmatprep.subr.mxu0 0.0
        %1049 = vmatpush2.xpose.msra.mxu0 0.0
        %1050 = vmatprep.subr.mxu0 0.0
        %1051 = vmatpush2.xpose.msra.mxu0 0.0
        %1052 = vmatprep.subr.mxu0 0.0
        %1053 = vmatpush2.xpose.msra.mxu0 0.0
        %1054 = vmatprep.subr.mxu0 0.0
        %1055 = vmatpush2.xpose.msra.mxu0 0.0
        %1056 = vmatprep.subr.mxu0 0.0
        %1057 = vmatpush2.xpose.msra.mxu0 0.0
        %1058 = vmatprep.subr.mxu0 0.0
        %1059 = vmatpush2.xpose.msra.mxu0 0.0
        %1060 = vmatprep.subr.mxu0 0.0
        %1061 = vmatpush2.xpose.msra.mxu0 0.0
        %1062 = vmatprep.mubr.f32.mxu0 0.0
        %1063 = vmatmul.mubr.f32.gmra.mxu0 %v994
        %v1064 = vpop.f32.mrf.mxu0
        %v1065 = vadd.f32 0.0, %v1064
        %v1066 = vpop.f32.mrf.mxu0
        %1067 = vdwg.mxu0
        %v1068 = vmul.f32 %v1065, 0.5
        %v1069 = vsel %vm738, %v1068, -inf
        %1070 = vmax.xlane.f32.xlu0 %v1069
        %v1071 = vpop.xlane.xlu0 %1070
        %v1072 = vsub.f32 %v1068, %v1071
        %v1073 = vmul.f32 %v1072, 1.442695
        %v1074 = vpow.pop %v1073
        %v1075 = vsel %vm738, %v1074, 0.0
        %1076 = vadd.xlane.f32.xlu0 %v1075
        %v1077 = vpop.xlane.xlu0 %1076
        %v1078 = vrcp.pop %v1077
        %v1079 = vmul.f32 %v1074, %v1078
        %1080 = vrot.lane.b32.xlu0 %v657, 120
        %v1081 = vpop.permute.xlu0 %1080
        %v1084 = vsel %vm738, %v1079, 0
        %1086 = vmatprep.subr.mxu0 0.0
        %1087 = vmatpush1.msra.mxu0 0.0
        %1088 = vmatprep.subr.mxu0 0.0
        %1089 = vmatpush1.msra.mxu0 0.0
        %1090 = vmatprep.subr.mxu0 0.0
        %1091 = vmatpush1.msra.mxu0 0.0
        %1092 = vmatprep.subr.mxu0 0.0
        %1093 = vmatpush1.msra.mxu0 0.0
        %1094 = vmatprep.subr.mxu0 0.0
        %1095 = vmatpush1.msra.mxu0 0.0
        %1096 = vmatprep.subr.mxu0 0.0
        %1097 = vmatpush1.msra.mxu0 0.0
        %1098 = vmatprep.subr.mxu0 0.0
        %1099 = vmatpush1.msra.mxu0 0.0
        %1100 = vmatprep.subr.mxu0 0.0
        %1101 = vmatpush1.msra.mxu0 0.0
        %1102 = vmatprep.subr.mxu0 0.0
        %1103 = vmatpush1.msra.mxu0 0.0
        %1104 = vmatprep.subr.mxu0 0.0
        %1105 = vmatpush1.msra.mxu0 0.0
        %1106 = vmatprep.subr.mxu0 0.0
        %1107 = vmatpush1.msra.mxu0 0.0
        %1108 = vmatprep.subr.mxu0 0.0
        %1109 = vmatpush1.msra.mxu0 0.0
        %1110 = vmatprep.subr.mxu0 0.0
        %1111 = vmatpush1.msra.mxu0 0.0
        %1112 = vmatprep.subr.mxu0 0.0
        %1113 = vmatpush1.msra.mxu0 0.0
        %1114 = vmatprep.subr.mxu0 0.0
        %1115 = vmatpush1.msra.mxu0 0.0
        %1116 = vmatprep.subr.mxu0 0.0
        %1117 = vmatpush1.msra.mxu0 %v1081
        %1118 = vmatprep.subr.mxu0 0.0
        %1119 = vmatpush2.msra.mxu0 0.0
        %1120 = vmatprep.subr.mxu0 0.0
        %1121 = vmatpush2.msra.mxu0 0.0
        %1122 = vmatprep.subr.mxu0 0.0
        %1123 = vmatpush2.msra.mxu0 0.0
        %1124 = vmatprep.subr.mxu0 0.0
        %1125 = vmatpush2.msra.mxu0 0.0
        %1126 = vmatprep.subr.mxu0 0.0
        %1127 = vmatpush2.msra.mxu0 0.0
        %1128 = vmatprep.subr.mxu0 0.0
        %1129 = vmatpush2.msra.mxu0 0.0
        %1130 = vmatprep.subr.mxu0 0.0
        %1131 = vmatpush2.msra.mxu0 0.0
        %1132 = vmatprep.subr.mxu0 0.0
        %1133 = vmatpush2.msra.mxu0 0.0
        %1134 = vmatprep.subr.mxu0 0.0
        %1135 = vmatpush2.msra.mxu0 0.0
        %1136 = vmatprep.subr.mxu0 0.0
        %1137 = vmatpush2.msra.mxu0 0.0
        %1138 = vmatprep.subr.mxu0 0.0
        %1139 = vmatpush2.msra.mxu0 0.0
        %1140 = vmatprep.subr.mxu0 0.0
        %1141 = vmatpush2.msra.mxu0 0.0
        %1142 = vmatprep.subr.mxu0 0.0
        %1143 = vmatpush2.msra.mxu0 0.0
        %1144 = vmatprep.subr.mxu0 0.0
        %1145 = vmatpush2.msra.mxu0 0.0
        %1146 = vmatprep.subr.mxu0 0.0
        %1147 = vmatpush2.msra.mxu0 0.0
        %1148 = vmatprep.subr.mxu0 0.0
        %1149 = vmatpush2.msra.mxu0 0.0
        %1150 = vmatprep.mubr.f32.mxu0 0.0
        %1151 = vmatmul.mubr.f32.gmra.mxu0 %v1084
        %v1152 = vpop.f32.mrf.mxu0
        %v1153 = vadd.f32 0.0, %v1152
        %v1154 = vpop.f32.mrf.mxu0
        %1155 = vdwg.mxu0
        %1156 = vrot.lane.b32.xlu0 %v495, 116
        %v1157 = vpop.permute.xlu0 %1156
        %1158 = vrot.lane.b32.xlu0 %v576, 116
        %v1159 = vpop.permute.xlu0 %1158
        %v1160 = vsel %vm660, %v1157, 0
        %v1162 = vsel %vm660, %v1159, 0
        %1164 = vmatprep.subr.mxu0 0.0
        %1165 = vmatpush1.xpose.msra.mxu0 0.0
        %1166 = vmatprep.subr.mxu0 0.0
        %1167 = vmatpush1.xpose.msra.mxu0 0.0
        %1168 = vmatprep.subr.mxu0 0.0
        %1169 = vmatpush1.xpose.msra.mxu0 0.0
        %1170 = vmatprep.subr.mxu0 0.0
        %1171 = vmatpush1.xpose.msra.mxu0 0.0
        %1172 = vmatprep.subr.mxu0 0.0
        %1173 = vmatpush1.xpose.msra.mxu0 0.0
        %1174 = vmatprep.subr.mxu0 0.0
        %1175 = vmatpush1.xpose.msra.mxu0 0.0
        %1176 = vmatprep.subr.mxu0 0.0
        %1177 = vmatpush1.xpose.msra.mxu0 0.0
        %1178 = vmatprep.subr.mxu0 0.0
        %1179 = vmatpush1.xpose.msra.mxu0 0.0
        %1180 = vmatprep.subr.mxu0 0.0
        %1181 = vmatpush1.xpose.msra.mxu0 0.0
        %1182 = vmatprep.subr.mxu0 0.0
        %1183 = vmatpush1.xpose.msra.mxu0 0.0
        %1184 = vmatprep.subr.mxu0 0.0
        %1185 = vmatpush1.xpose.msra.mxu0 0.0
        %1186 = vmatprep.subr.mxu0 0.0
        %1187 = vmatpush1.xpose.msra.mxu0 0.0
        %1188 = vmatprep.subr.mxu0 0.0
        %1189 = vmatpush1.xpose.msra.mxu0 0.0
        %1190 = vmatprep.subr.mxu0 0.0
        %1191 = vmatpush1.xpose.msra.mxu0 0.0
        %1192 = vmatprep.subr.mxu0 0.0
        %1193 = vmatpush1.xpose.msra.mxu0 0.0
        %1194 = vmatprep.subr.mxu0 0.0
        %1195 = vmatpush1.xpose.msra.mxu0 %v1162
        %1196 = vmatprep.subr.mxu0 0.0
        %1197 = vmatpush2.xpose.msra.mxu0 0.0
        %1198 = vmatprep.subr.mxu0 0.0
        %1199 = vmatpush2.xpose.msra.mxu0 0.0
        %1200 = vmatprep.subr.mxu0 0.0
        %1201 = vmatpush2.xpose.msra.mxu0 0.0
        %1202 = vmatprep.subr.mxu0 0.0
        %1203 = vmatpush2.xpose.msra.mxu0 0.0
        %1204 = vmatprep.subr.mxu0 0.0
        %1205 = vmatpush2.xpose.msra.mxu0 0.0
        %1206 = vmatprep.subr.mxu0 0.0
        %1207 = vmatpush2.xpose.msra.mxu0 0.0
        %1208 = vmatprep.subr.mxu0 0.0
        %1209 = vmatpush2.xpose.msra.mxu0 0.0
        %1210 = vmatprep.subr.mxu0 0.0
        %1211 = vmatpush2.xpose.msra.mxu0 0.0
        %1212 = vmatprep.subr.mxu0 0.0
        %1213 = vmatpush2.xpose.msra.mxu0 0.0
        %1214 = vmatprep.subr.mxu0 0.0
        %1215 = vmatpush2.xpose.msra.mxu0 0.0
        %1216 = vmatprep.subr.mxu0 0.0
        %1217 = vmatpush2.xpose.msra.mxu0 0.0
        %1218 = vmatprep.subr.mxu0 0.0
        %1219 = vmatpush2.xpose.msra.mxu0 0.0
        %1220 = vmatprep.subr.mxu0 0.0
        %1221 = vmatpush2.xpose.msra.mxu0 0.0
        %1222 = vmatprep.subr.mxu0 0.0
        %1223 = vmatpush2.xpose.msra.mxu0 0.0
        %1224 = vmatprep.subr.mxu0 0.0
        %1225 = vmatpush2.xpose.msra.mxu0 0.0
        %1226 = vmatprep.subr.mxu0 0.0
        %1227 = vmatpush2.xpose.msra.mxu0 0.0
        %1228 = vmatprep.mubr.f32.mxu0 0.0
        %1229 = vmatmul.mubr.f32.gmra.mxu0 %v1160
        %v1230 = vpop.f32.mrf.mxu0
        %v1231 = vadd.f32 0.0, %v1230
        %v1232 = vpop.f32.mrf.mxu0
        %1233 = vdwg.mxu0
        %v1234 = vmul.f32 %v1231, 0.5
        %v1235 = vsel %vm738, %v1234, -inf
        %1236 = vmax.xlane.f32.xlu0 %v1235
        %v1237 = vpop.xlane.xlu0 %1236
        %v1238 = vsub.f32 %v1234, %v1237
        %v1239 = vmul.f32 %v1238, 1.442695
        %v1240 = vpow.pop %v1239
        %v1241 = vsel %vm738, %v1240, 0.0
        %1242 = vadd.xlane.f32.xlu0 %v1241
        %v1243 = vpop.xlane.xlu0 %1242
        %v1244 = vrcp.pop %v1243
        %v1245 = vmul.f32 %v1240, %v1244
        %1246 = vrot.lane.b32.xlu0 %v657, 116
        %v1247 = vpop.permute.xlu0 %1246
        %v1250 = vsel %vm738, %v1245, 0
        %1252 = vmatprep.subr.mxu0 0.0
        %1253 = vmatpush1.msra.mxu0 0.0
        %1254 = vmatprep.subr.mxu0 0.0
        %1255 = vmatpush1.msra.mxu0 0.0
        %1256 = vmatprep.subr.mxu0 0.0
        %1257 = vmatpush1.msra.mxu0 0.0
        %1258 = vmatprep.subr.mxu0 0.0
        %1259 = vmatpush1.msra.mxu0 0.0
        %1260 = vmatprep.subr.mxu0 0.0
        %1261 = vmatpush1.msra.mxu0 0.0
        %1262 = vmatprep.subr.mxu0 0.0
        %1263 = vmatpush1.msra.mxu0 0.0
        %1264 = vmatprep.subr.mxu0 0.0
        %1265 = vmatpush1.msra.mxu0 0.0
        %1266 = vmatprep.subr.mxu0 0.0
        %1267 = vmatpush1.msra.mxu0 0.0
        %1268 = vmatprep.subr.mxu0 0.0
        %1269 = vmatpush1.msra.mxu0 0.0
        %1270 = vmatprep.subr.mxu0 0.0
        %1271 = vmatpush1.msra.mxu0 0.0
        %1272 = vmatprep.subr.mxu0 0.0
        %1273 = vmatpush1.msra.mxu0 0.0
        %1274 = vmatprep.subr.mxu0 0.0
        %1275 = vmatpush1.msra.mxu0 0.0
        %1276 = vmatprep.subr.mxu0 0.0
        %1277 = vmatpush1.msra.mxu0 0.0
        %1278 = vmatprep.subr.mxu0 0.0
        %1279 = vmatpush1.msra.mxu0 0.0
        %1280 = vmatprep.subr.mxu0 0.0
        %1281 = vmatpush1.msra.mxu0 0.0
        %1282 = vmatprep.subr.mxu0 0.0
        %1283 = vmatpush1.msra.mxu0 %v1247
        %1284 = vmatprep.subr.mxu0 0.0
        %1285 = vmatpush2.msra.mxu0 0.0
        %1286 = vmatprep.subr.mxu0 0.0
        %1287 = vmatpush2.msra.mxu0 0.0
        %1288 = vmatprep.subr.mxu0 0.0
        %1289 = vmatpush2.msra.mxu0 0.0
        %1290 = vmatprep.subr.mxu0 0.0
        %1291 = vmatpush2.msra.mxu0 0.0
        %1292 = vmatprep.subr.mxu0 0.0
        %1293 = vmatpush2.msra.mxu0 0.0
        %1294 = vmatprep.subr.mxu0 0.0
        %1295 = vmatpush2.msra.mxu0 0.0
        %1296 = vmatprep.subr.mxu0 0.0
        %1297 = vmatpush2.msra.mxu0 0.0
        %1298 = vmatprep.subr.mxu0 0.0
        %1299 = vmatpush2.msra.mxu0 0.0
        %1300 = vmatprep.subr.mxu0 0.0
        %1301 = vmatpush2.msra.mxu0 0.0
        %1302 = vmatprep.subr.mxu0 0.0
        %1303 = vmatpush2.msra.mxu0 0.0
        %1304 = vmatprep.subr.mxu0 0.0
        %1305 = vmatpush2.msra.mxu0 0.0
        %1306 = vmatprep.subr.mxu0 0.0
        %1307 = vmatpush2.msra.mxu0 0.0
        %1308 = vmatprep.subr.mxu0 0.0
        %1309 = vmatpush2.msra.mxu0 0.0
        %1310 = vmatprep.subr.mxu0 0.0
        %1311 = vmatpush2.msra.mxu0 0.0
        %1312 = vmatprep.subr.mxu0 0.0
        %1313 = vmatpush2.msra.mxu0 0.0
        %1314 = vmatprep.subr.mxu0 0.0
        %1315 = vmatpush2.msra.mxu0 0.0
        %1316 = vmatprep.mubr.f32.mxu0 0.0
        %1317 = vmatmul.mubr.f32.gmra.mxu0 %v1250
        %v1318 = vpop.f32.mrf.mxu0
        %v1319 = vadd.f32 0.0, %v1318
        %v1320 = vpop.f32.mrf.mxu0
        %1321 = vdwg.mxu0
        %1322 = vrot.lane.b32.xlu0 %v495, 112
        %v1323 = vpop.permute.xlu0 %1322
        %1324 = vrot.lane.b32.xlu0 %v576, 112
        %v1325 = vpop.permute.xlu0 %1324
        %v1326 = vsel %vm660, %v1323, 0
        %v1328 = vsel %vm660, %v1325, 0
        %1330 = vmatprep.subr.mxu0 0.0
        %1331 = vmatpush1.xpose.msra.mxu0 0.0
        %1332 = vmatprep.subr.mxu0 0.0
        %1333 = vmatpush1.xpose.msra.mxu0 0.0
        %1334 = vmatprep.subr.mxu0 0.0
        %1335 = vmatpush1.xpose.msra.mxu0 0.0
        %1336 = vmatprep.subr.mxu0 0.0
        %1337 = vmatpush1.xpose.msra.mxu0 0.0
        %1338 = vmatprep.subr.mxu0 0.0
        %1339 = vmatpush1.xpose.msra.mxu0 0.0
        %1340 = vmatprep.subr.mxu0 0.0
        %1341 = vmatpush1.xpose.msra.mxu0 0.0
        %1342 = vmatprep.subr.mxu0 0.0
        %1343 = vmatpush1.xpose.msra.mxu0 0.0
        %1344 = vmatprep.subr.mxu0 0.0
        %1345 = vmatpush1.xpose.msra.mxu0 0.0
        %1346 = vmatprep.subr.mxu0 0.0
        %1347 = vmatpush1.xpose.msra.mxu0 0.0
        %1348 = vmatprep.subr.mxu0 0.0
        %1349 = vmatpush1.xpose.msra.mxu0 0.0
        %1350 = vmatprep.subr.mxu0 0.0
        %1351 = vmatpush1.xpose.msra.mxu0 0.0
        %1352 = vmatprep.subr.mxu0 0.0
        %1353 = vmatpush1.xpose.msra.mxu0 0.0
        %1354 = vmatprep.subr.mxu0 0.0
        %1355 = vmatpush1.xpose.msra.mxu0 0.0
        %1356 = vmatprep.subr.mxu0 0.0
        %1357 = vmatpush1.xpose.msra.mxu0 0.0
        %1358 = vmatprep.subr.mxu0 0.0
        %1359 = vmatpush1.xpose.msra.mxu0 0.0
        %1360 = vmatprep.subr.mxu0 0.0
        %1361 = vmatpush1.xpose.msra.mxu0 %v1328
        %1362 = vmatprep.subr.mxu0 0.0
        %1363 = vmatpush2.xpose.msra.mxu0 0.0
        %1364 = vmatprep.subr.mxu0 0.0
        %1365 = vmatpush2.xpose.msra.mxu0 0.0
        %1366 = vmatprep.subr.mxu0 0.0
        %1367 = vmatpush2.xpose.msra.mxu0 0.0
        %1368 = vmatprep.subr.mxu0 0.0
        %1369 = vmatpush2.xpose.msra.mxu0 0.0
        %1370 = vmatprep.subr.mxu0 0.0
        %1371 = vmatpush2.xpose.msra.mxu0 0.0
        %1372 = vmatprep.subr.mxu0 0.0
        %1373 = vmatpush2.xpose.msra.mxu0 0.0
        %1374 = vmatprep.subr.mxu0 0.0
        %1375 = vmatpush2.xpose.msra.mxu0 0.0
        %1376 = vmatprep.subr.mxu0 0.0
        %1377 = vmatpush2.xpose.msra.mxu0 0.0
        %1378 = vmatprep.subr.mxu0 0.0
        %1379 = vmatpush2.xpose.msra.mxu0 0.0
        %1380 = vmatprep.subr.mxu0 0.0
        %1381 = vmatpush2.xpose.msra.mxu0 0.0
        %1382 = vmatprep.subr.mxu0 0.0
        %1383 = vmatpush2.xpose.msra.mxu0 0.0
        %1384 = vmatprep.subr.mxu0 0.0
        %1385 = vmatpush2.xpose.msra.mxu0 0.0
        %1386 = vmatprep.subr.mxu0 0.0
        %1387 = vmatpush2.xpose.msra.mxu0 0.0
        %1388 = vmatprep.subr.mxu0 0.0
        %1389 = vmatpush2.xpose.msra.mxu0 0.0
        %1390 = vmatprep.subr.mxu0 0.0
        %1391 = vmatpush2.xpose.msra.mxu0 0.0
        %1392 = vmatprep.subr.mxu0 0.0
        %1393 = vmatpush2.xpose.msra.mxu0 0.0
        %1394 = vmatprep.mubr.f32.mxu0 0.0
        %1395 = vmatmul.mubr.f32.gmra.mxu0 %v1326
        %v1396 = vpop.f32.mrf.mxu0
        %v1397 = vadd.f32 0.0, %v1396
        %v1398 = vpop.f32.mrf.mxu0
        %1399 = vdwg.mxu0
        %v1400 = vmul.f32 %v1397, 0.5
        %v1401 = vsel %vm738, %v1400, -inf
        %1402 = vmax.xlane.f32.xlu0 %v1401
        %v1403 = vpop.xlane.xlu0 %1402
        %v1404 = vsub.f32 %v1400, %v1403
        %v1405 = vmul.f32 %v1404, 1.442695
        %v1406 = vpow.pop %v1405
        %v1407 = vsel %vm738, %v1406, 0.0
        %1408 = vadd.xlane.f32.xlu0 %v1407
        %v1409 = vpop.xlane.xlu0 %1408
        %v1410 = vrcp.pop %v1409
        %v1411 = vmul.f32 %v1406, %v1410
        %1412 = vrot.lane.b32.xlu0 %v657, 112
        %v1413 = vpop.permute.xlu0 %1412
        %v1416 = vsel %vm738, %v1411, 0
        %1418 = vmatprep.subr.mxu0 0.0
        %1419 = vmatpush1.msra.mxu0 0.0
        %1420 = vmatprep.subr.mxu0 0.0
        %1421 = vmatpush1.msra.mxu0 0.0
        %1422 = vmatprep.subr.mxu0 0.0
        %1423 = vmatpush1.msra.mxu0 0.0
        %1424 = vmatprep.subr.mxu0 0.0
        %1425 = vmatpush1.msra.mxu0 0.0
        %1426 = vmatprep.subr.mxu0 0.0
        %1427 = vmatpush1.msra.mxu0 0.0
        %1428 = vmatprep.subr.mxu0 0.0
        %1429 = vmatpush1.msra.mxu0 0.0
        %1430 = vmatprep.subr.mxu0 0.0
        %1431 = vmatpush1.msra.mxu0 0.0
        %1432 = vmatprep.subr.mxu0 0.0
        %1433 = vmatpush1.msra.mxu0 0.0
        %1434 = vmatprep.subr.mxu0 0.0
        %1435 = vmatpush1.msra.mxu0 0.0
        %1436 = vmatprep.subr.mxu0 0.0
        %1437 = vmatpush1.msra.mxu0 0.0
        %1438 = vmatprep.subr.mxu0 0.0
        %1439 = vmatpush1.msra.mxu0 0.0
        %1440 = vmatprep.subr.mxu0 0.0
        %1441 = vmatpush1.msra.mxu0 0.0
        %1442 = vmatprep.subr.mxu0 0.0
        %1443 = vmatpush1.msra.mxu0 0.0
        %1444 = vmatprep.subr.mxu0 0.0
        %1445 = vmatpush1.msra.mxu0 0.0
        %1446 = vmatprep.subr.mxu0 0.0
        %1447 = vmatpush1.msra.mxu0 0.0
        %1448 = vmatprep.subr.mxu0 0.0
        %1449 = vmatpush1.msra.mxu0 %v1413
        %1450 = vmatprep.subr.mxu0 0.0
        %1451 = vmatpush2.msra.mxu0 0.0
        %1452 = vmatprep.subr.mxu0 0.0
        %1453 = vmatpush2.msra.mxu0 0.0
        %1454 = vmatprep.subr.mxu0 0.0
        %1455 = vmatpush2.msra.mxu0 0.0
        %1456 = vmatprep.subr.mxu0 0.0
        %1457 = vmatpush2.msra.mxu0 0.0
        %1458 = vmatprep.subr.mxu0 0.0
        %1459 = vmatpush2.msra.mxu0 0.0
        %1460 = vmatprep.subr.mxu0 0.0
        %1461 = vmatpush2.msra.mxu0 0.0
        %1462 = vmatprep.subr.mxu0 0.0
        %1463 = vmatpush2.msra.mxu0 0.0
        %1464 = vmatprep.subr.mxu0 0.0
        %1465 = vmatpush2.msra.mxu0 0.0
        %1466 = vmatprep.subr.mxu0 0.0
        %1467 = vmatpush2.msra.mxu0 0.0
        %1468 = vmatprep.subr.mxu0 0.0
        %1469 = vmatpush2.msra.mxu0 0.0
        %1470 = vmatprep.subr.mxu0 0.0
        %1471 = vmatpush2.msra.mxu0 0.0
        %1472 = vmatprep.subr.mxu0 0.0
        %1473 = vmatpush2.msra.mxu0 0.0
        %1474 = vmatprep.subr.mxu0 0.0
        %1475 = vmatpush2.msra.mxu0 0.0
        %1476 = vmatprep.subr.mxu0 0.0
        %1477 = vmatpush2.msra.mxu0 0.0
        %1478 = vmatprep.subr.mxu0 0.0
        %1479 = vmatpush2.msra.mxu0 0.0
        %1480 = vmatprep.subr.mxu0 0.0
        %1481 = vmatpush2.msra.mxu0 0.0
        %1482 = vmatprep.mubr.f32.mxu0 0.0
        %1483 = vmatmul.mubr.f32.gmra.mxu0 %v1416
        %v1484 = vpop.f32.mrf.mxu0
        %v1485 = vadd.f32 0.0, %v1484
        %v1486 = vpop.f32.mrf.mxu0
        %1487 = vdwg.mxu0
        %1488 = vrot.lane.b32.xlu0 %v495, 108
        %v1489 = vpop.permute.xlu0 %1488
        %1490 = vrot.lane.b32.xlu0 %v576, 108
        %v1491 = vpop.permute.xlu0 %1490
        %v1492 = vsel %vm660, %v1489, 0
        %v1494 = vsel %vm660, %v1491, 0
        %1496 = vmatprep.subr.mxu0 0.0
        %1497 = vmatpush1.xpose.msra.mxu0 0.0
        %1498 = vmatprep.subr.mxu0 0.0
        %1499 = vmatpush1.xpose.msra.mxu0 0.0
        %1500 = vmatprep.subr.mxu0 0.0
        %1501 = vmatpush1.xpose.msra.mxu0 0.0
        %1502 = vmatprep.subr.mxu0 0.0
        %1503 = vmatpush1.xpose.msra.mxu0 0.0
        %1504 = vmatprep.subr.mxu0 0.0
        %1505 = vmatpush1.xpose.msra.mxu0 0.0
        %1506 = vmatprep.subr.mxu0 0.0
        %1507 = vmatpush1.xpose.msra.mxu0 0.0
        %1508 = vmatprep.subr.mxu0 0.0
        %1509 = vmatpush1.xpose.msra.mxu0 0.0
        %1510 = vmatprep.subr.mxu0 0.0
        %1511 = vmatpush1.xpose.msra.mxu0 0.0
        %1512 = vmatprep.subr.mxu0 0.0
        %1513 = vmatpush1.xpose.msra.mxu0 0.0
        %1514 = vmatprep.subr.mxu0 0.0
        %1515 = vmatpush1.xpose.msra.mxu0 0.0
        %1516 = vmatprep.subr.mxu0 0.0
        %1517 = vmatpush1.xpose.msra.mxu0 0.0
        %1518 = vmatprep.subr.mxu0 0.0
        %1519 = vmatpush1.xpose.msra.mxu0 0.0
        %1520 = vmatprep.subr.mxu0 0.0
        %1521 = vmatpush1.xpose.msra.mxu0 0.0
        %1522 = vmatprep.subr.mxu0 0.0
        %1523 = vmatpush1.xpose.msra.mxu0 0.0
        %1524 = vmatprep.subr.mxu0 0.0
        %1525 = vmatpush1.xpose.msra.mxu0 0.0
        %1526 = vmatprep.subr.mxu0 0.0
        %1527 = vmatpush1.xpose.msra.mxu0 %v1494
        %1528 = vmatprep.subr.mxu0 0.0
        %1529 = vmatpush2.xpose.msra.mxu0 0.0
        %1530 = vmatprep.subr.mxu0 0.0
        %1531 = vmatpush2.xpose.msra.mxu0 0.0
        %1532 = vmatprep.subr.mxu0 0.0
        %1533 = vmatpush2.xpose.msra.mxu0 0.0
        %1534 = vmatprep.subr.mxu0 0.0
        %1535 = vmatpush2.xpose.msra.mxu0 0.0
        %1536 = vmatprep.subr.mxu0 0.0
        %1537 = vmatpush2.xpose.msra.mxu0 0.0
        %1538 = vmatprep.subr.mxu0 0.0
        %1539 = vmatpush2.xpose.msra.mxu0 0.0
        %1540 = vmatprep.subr.mxu0 0.0
        %1541 = vmatpush2.xpose.msra.mxu0 0.0
        %1542 = vmatprep.subr.mxu0 0.0
        %1543 = vmatpush2.xpose.msra.mxu0 0.0
        %1544 = vmatprep.subr.mxu0 0.0
        %1545 = vmatpush2.xpose.msra.mxu0 0.0
        %1546 = vmatprep.subr.mxu0 0.0
        %1547 = vmatpush2.xpose.msra.mxu0 0.0
        %1548 = vmatprep.subr.mxu0 0.0
        %1549 = vmatpush2.xpose.msra.mxu0 0.0
        %1550 = vmatprep.subr.mxu0 0.0
        %1551 = vmatpush2.xpose.msra.mxu0 0.0
        %1552 = vmatprep.subr.mxu0 0.0
        %1553 = vmatpush2.xpose.msra.mxu0 0.0
        %1554 = vmatprep.subr.mxu0 0.0
        %1555 = vmatpush2.xpose.msra.mxu0 0.0
        %1556 = vmatprep.subr.mxu0 0.0
        %1557 = vmatpush2.xpose.msra.mxu0 0.0
        %1558 = vmatprep.subr.mxu0 0.0
        %1559 = vmatpush2.xpose.msra.mxu0 0.0
        %1560 = vmatprep.mubr.f32.mxu0 0.0
        %1561 = vmatmul.mubr.f32.gmra.mxu0 %v1492
        %v1562 = vpop.f32.mrf.mxu0
        %v1563 = vadd.f32 0.0, %v1562
        %v1564 = vpop.f32.mrf.mxu0
        %1565 = vdwg.mxu0
        %v1566 = vmul.f32 %v1563, 0.5
        %v1567 = vsel %vm738, %v1566, -inf
        %1568 = vmax.xlane.f32.xlu0 %v1567
        %v1569 = vpop.xlane.xlu0 %1568
        %v1570 = vsub.f32 %v1566, %v1569
        %v1571 = vmul.f32 %v1570, 1.442695
        %v1572 = vpow.pop %v1571
        %v1573 = vsel %vm738, %v1572, 0.0
        %1574 = vadd.xlane.f32.xlu0 %v1573
        %v1575 = vpop.xlane.xlu0 %1574
        %v1576 = vrcp.pop %v1575
        %v1577 = vmul.f32 %v1572, %v1576
        %1578 = vrot.lane.b32.xlu0 %v657, 108
        %v1579 = vpop.permute.xlu0 %1578
        %v1582 = vsel %vm738, %v1577, 0
        %1584 = vmatprep.subr.mxu0 0.0
        %1585 = vmatpush1.msra.mxu0 0.0
        %1586 = vmatprep.subr.mxu0 0.0
        %1587 = vmatpush1.msra.mxu0 0.0
        %1588 = vmatprep.subr.mxu0 0.0
        %1589 = vmatpush1.msra.mxu0 0.0
        %1590 = vmatprep.subr.mxu0 0.0
        %1591 = vmatpush1.msra.mxu0 0.0
        %1592 = vmatprep.subr.mxu0 0.0
        %1593 = vmatpush1.msra.mxu0 0.0
        %1594 = vmatprep.subr.mxu0 0.0
        %1595 = vmatpush1.msra.mxu0 0.0
        %1596 = vmatprep.subr.mxu0 0.0
        %1597 = vmatpush1.msra.mxu0 0.0
        %1598 = vmatprep.subr.mxu0 0.0
        %1599 = vmatpush1.msra.mxu0 0.0
        %1600 = vmatprep.subr.mxu0 0.0
        %1601 = vmatpush1.msra.mxu0 0.0
        %1602 = vmatprep.subr.mxu0 0.0
        %1603 = vmatpush1.msra.mxu0 0.0
        %1604 = vmatprep.subr.mxu0 0.0
        %1605 = vmatpush1.msra.mxu0 0.0
        %1606 = vmatprep.subr.mxu0 0.0
        %1607 = vmatpush1.msra.mxu0 0.0
        %1608 = vmatprep.subr.mxu0 0.0
        %1609 = vmatpush1.msra.mxu0 0.0
        %1610 = vmatprep.subr.mxu0 0.0
        %1611 = vmatpush1.msra.mxu0 0.0
        %1612 = vmatprep.subr.mxu0 0.0
        %1613 = vmatpush1.msra.mxu0 0.0
        %1614 = vmatprep.subr.mxu0 0.0
        %1615 = vmatpush1.msra.mxu0 %v1579
        %1616 = vmatprep.subr.mxu0 0.0
        %1617 = vmatpush2.msra.mxu0 0.0
        %1618 = vmatprep.subr.mxu0 0.0
        %1619 = vmatpush2.msra.mxu0 0.0
        %1620 = vmatprep.subr.mxu0 0.0
        %1621 = vmatpush2.msra.mxu0 0.0
        %1622 = vmatprep.subr.mxu0 0.0
        %1623 = vmatpush2.msra.mxu0 0.0
        %1624 = vmatprep.subr.mxu0 0.0
        %1625 = vmatpush2.msra.mxu0 0.0
        %1626 = vmatprep.subr.mxu0 0.0
        %1627 = vmatpush2.msra.mxu0 0.0
        %1628 = vmatprep.subr.mxu0 0.0
        %1629 = vmatpush2.msra.mxu0 0.0
        %1630 = vmatprep.subr.mxu0 0.0
        %1631 = vmatpush2.msra.mxu0 0.0
        %1632 = vmatprep.subr.mxu0 0.0
        %1633 = vmatpush2.msra.mxu0 0.0
        %1634 = vmatprep.subr.mxu0 0.0
        %1635 = vmatpush2.msra.mxu0 0.0
        %1636 = vmatprep.subr.mxu0 0.0
        %1637 = vmatpush2.msra.mxu0 0.0
        %1638 = vmatprep.subr.mxu0 0.0
        %1639 = vmatpush2.msra.mxu0 0.0
        %1640 = vmatprep.subr.mxu0 0.0
        %1641 = vmatpush2.msra.mxu0 0.0
        %1642 = vmatprep.subr.mxu0 0.0
        %1643 = vmatpush2.msra.mxu0 0.0
        %1644 = vmatprep.subr.mxu0 0.0
        %1645 = vmatpush2.msra.mxu0 0.0
        %1646 = vmatprep.subr.mxu0 0.0
        %1647 = vmatpush2.msra.mxu0 0.0
        %1648 = vmatprep.mubr.f32.mxu0 0.0
        %1649 = vmatmul.mubr.f32.gmra.mxu0 %v1582
        %v1650 = vpop.f32.mrf.mxu0
        %v1651 = vadd.f32 0.0, %v1650
        %v1652 = vpop.f32.mrf.mxu0
        %1653 = vdwg.mxu0
        %1654 = vrot.lane.b32.xlu0 %v495, 104
        %v1655 = vpop.permute.xlu0 %1654
        %1656 = vrot.lane.b32.xlu0 %v576, 104
        %v1657 = vpop.permute.xlu0 %1656
        %v1658 = vsel %vm660, %v1655, 0
        %v1660 = vsel %vm660, %v1657, 0
        %1662 = vmatprep.subr.mxu0 0.0
        %1663 = vmatpush1.xpose.msra.mxu0 0.0
        %1664 = vmatprep.subr.mxu0 0.0
        %1665 = vmatpush1.xpose.msra.mxu0 0.0
        %1666 = vmatprep.subr.mxu0 0.0
        %1667 = vmatpush1.xpose.msra.mxu0 0.0
        %1668 = vmatprep.subr.mxu0 0.0
        %1669 = vmatpush1.xpose.msra.mxu0 0.0
        %1670 = vmatprep.subr.mxu0 0.0
        %1671 = vmatpush1.xpose.msra.mxu0 0.0
        %1672 = vmatprep.subr.mxu0 0.0
        %1673 = vmatpush1.xpose.msra.mxu0 0.0
        %1674 = vmatprep.subr.mxu0 0.0
        %1675 = vmatpush1.xpose.msra.mxu0 0.0
        %1676 = vmatprep.subr.mxu0 0.0
        %1677 = vmatpush1.xpose.msra.mxu0 0.0
        %1678 = vmatprep.subr.mxu0 0.0
        %1679 = vmatpush1.xpose.msra.mxu0 0.0
        %1680 = vmatprep.subr.mxu0 0.0
        %1681 = vmatpush1.xpose.msra.mxu0 0.0
        %1682 = vmatprep.subr.mxu0 0.0
        %1683 = vmatpush1.xpose.msra.mxu0 0.0
        %1684 = vmatprep.subr.mxu0 0.0
        %1685 = vmatpush1.xpose.msra.mxu0 0.0
        %1686 = vmatprep.subr.mxu0 0.0
        %1687 = vmatpush1.xpose.msra.mxu0 0.0
        %1688 = vmatprep.subr.mxu0 0.0
        %1689 = vmatpush1.xpose.msra.mxu0 0.0
        %1690 = vmatprep.subr.mxu0 0.0
        %1691 = vmatpush1.xpose.msra.mxu0 0.0
        %1692 = vmatprep.subr.mxu0 0.0
        %1693 = vmatpush1.xpose.msra.mxu0 %v1660
        %1694 = vmatprep.subr.mxu0 0.0
        %1695 = vmatpush2.xpose.msra.mxu0 0.0
        %1696 = vmatprep.subr.mxu0 0.0
        %1697 = vmatpush2.xpose.msra.mxu0 0.0
        %1698 = vmatprep.subr.mxu0 0.0
        %1699 = vmatpush2.xpose.msra.mxu0 0.0
        %1700 = vmatprep.subr.mxu0 0.0
        %1701 = vmatpush2.xpose.msra.mxu0 0.0
        %1702 = vmatprep.subr.mxu0 0.0
        %1703 = vmatpush2.xpose.msra.mxu0 0.0
        %1704 = vmatprep.subr.mxu0 0.0
        %1705 = vmatpush2.xpose.msra.mxu0 0.0
        %1706 = vmatprep.subr.mxu0 0.0
        %1707 = vmatpush2.xpose.msra.mxu0 0.0
        %1708 = vmatprep.subr.mxu0 0.0
        %1709 = vmatpush2.xpose.msra.mxu0 0.0
        %1710 = vmatprep.subr.mxu0 0.0
        %1711 = vmatpush2.xpose.msra.mxu0 0.0
        %1712 = vmatprep.subr.mxu0 0.0
        %1713 = vmatpush2.xpose.msra.mxu0 0.0
        %1714 = vmatprep.subr.mxu0 0.0
        %1715 = vmatpush2.xpose.msra.mxu0 0.0
        %1716 = vmatprep.subr.mxu0 0.0
        %1717 = vmatpush2.xpose.msra.mxu0 0.0
        %1718 = vmatprep.subr.mxu0 0.0
        %1719 = vmatpush2.xpose.msra.mxu0 0.0
        %1720 = vmatprep.subr.mxu0 0.0
        %1721 = vmatpush2.xpose.msra.mxu0 0.0
        %1722 = vmatprep.subr.mxu0 0.0
        %1723 = vmatpush2.xpose.msra.mxu0 0.0
        %1724 = vmatprep.subr.mxu0 0.0
        %1725 = vmatpush2.xpose.msra.mxu0 0.0
        %1726 = vmatprep.mubr.f32.mxu0 0.0
        %1727 = vmatmul.mubr.f32.gmra.mxu0 %v1658
        %v1728 = vpop.f32.mrf.mxu0
        %v1729 = vadd.f32 0.0, %v1728
        %v1730 = vpop.f32.mrf.mxu0
        %1731 = vdwg.mxu0
        %v1732 = vmul.f32 %v1729, 0.5
        %v1733 = vsel %vm738, %v1732, -inf
        %1734 = vmax.xlane.f32.xlu0 %v1733
        %v1735 = vpop.xlane.xlu0 %1734
        %v1736 = vsub.f32 %v1732, %v1735
        %v1737 = vmul.f32 %v1736, 1.442695
        %v1738 = vpow.pop %v1737
        %v1739 = vsel %vm738, %v1738, 0.0
        %1740 = vadd.xlane.f32.xlu0 %v1739
        %v1741 = vpop.xlane.xlu0 %1740
        %v1742 = vrcp.pop %v1741
        %v1743 = vmul.f32 %v1738, %v1742
        %1744 = vrot.lane.b32.xlu0 %v657, 104
        %v1745 = vpop.permute.xlu0 %1744
        %v1748 = vsel %vm738, %v1743, 0
        %1750 = vmatprep.subr.mxu0 0.0
        %1751 = vmatpush1.msra.mxu0 0.0
        %1752 = vmatprep.subr.mxu0 0.0
        %1753 = vmatpush1.msra.mxu0 0.0
        %1754 = vmatprep.subr.mxu0 0.0
        %1755 = vmatpush1.msra.mxu0 0.0
        %1756 = vmatprep.subr.mxu0 0.0
        %1757 = vmatpush1.msra.mxu0 0.0
        %1758 = vmatprep.subr.mxu0 0.0
        %1759 = vmatpush1.msra.mxu0 0.0
        %1760 = vmatprep.subr.mxu0 0.0
        %1761 = vmatpush1.msra.mxu0 0.0
        %1762 = vmatprep.subr.mxu0 0.0
        %1763 = vmatpush1.msra.mxu0 0.0
        %1764 = vmatprep.subr.mxu0 0.0
        %1765 = vmatpush1.msra.mxu0 0.0
        %1766 = vmatprep.subr.mxu0 0.0
        %1767 = vmatpush1.msra.mxu0 0.0
        %1768 = vmatprep.subr.mxu0 0.0
        %1769 = vmatpush1.msra.mxu0 0.0
        %1770 = vmatprep.subr.mxu0 0.0
        %1771 = vmatpush1.msra.mxu0 0.0
        %1772 = vmatprep.subr.mxu0 0.0
        %1773 = vmatpush1.msra.mxu0 0.0
        %1774 = vmatprep.subr.mxu0 0.0
        %1775 = vmatpush1.msra.mxu0 0.0
        %1776 = vmatprep.subr.mxu0 0.0
        %1777 = vmatpush1.msra.mxu0 0.0
        %1778 = vmatprep.subr.mxu0 0.0
        %1779 = vmatpush1.msra.mxu0 0.0
        %1780 = vmatprep.subr.mxu0 0.0
        %1781 = vmatpush1.msra.mxu0 %v1745
        %1782 = vmatprep.subr.mxu0 0.0
        %1783 = vmatpush2.msra.mxu0 0.0
        %1784 = vmatprep.subr.mxu0 0.0
        %1785 = vmatpush2.msra.mxu0 0.0
        %1786 = vmatprep.subr.mxu0 0.0
        %1787 = vmatpush2.msra.mxu0 0.0
        %1788 = vmatprep.subr.mxu0 0.0
        %1789 = vmatpush2.msra.mxu0 0.0
        %1790 = vmatprep.subr.mxu0 0.0
        %1791 = vmatpush2.msra.mxu0 0.0
        %1792 = vmatprep.subr.mxu0 0.0
        %1793 = vmatpush2.msra.mxu0 0.0
        %1794 = vmatprep.subr.mxu0 0.0
        %1795 = vmatpush2.msra.mxu0 0.0
        %1796 = vmatprep.subr.mxu0 0.0
        %1797 = vmatpush2.msra.mxu0 0.0
        %1798 = vmatprep.subr.mxu0 0.0
        %1799 = vmatpush2.msra.mxu0 0.0
        %1800 = vmatprep.subr.mxu0 0.0
        %1801 = vmatpush2.msra.mxu0 0.0
        %1802 = vmatprep.subr.mxu0 0.0
        %1803 = vmatpush2.msra.mxu0 0.0
        %1804 = vmatprep.subr.mxu0 0.0
        %1805 = vmatpush2.msra.mxu0 0.0
        %1806 = vmatprep.subr.mxu0 0.0
        %1807 = vmatpush2.msra.mxu0 0.0
        %1808 = vmatprep.subr.mxu0 0.0
        %1809 = vmatpush2.msra.mxu0 0.0
        %1810 = vmatprep.subr.mxu0 0.0
        %1811 = vmatpush2.msra.mxu0 0.0
        %1812 = vmatprep.subr.mxu0 0.0
        %1813 = vmatpush2.msra.mxu0 0.0
        %1814 = vmatprep.mubr.f32.mxu0 0.0
        %1815 = vmatmul.mubr.f32.gmra.mxu0 %v1748
        %v1816 = vpop.f32.mrf.mxu0
        %v1817 = vadd.f32 0.0, %v1816
        %v1818 = vpop.f32.mrf.mxu0
        %1819 = vdwg.mxu0
        %1820 = vrot.lane.b32.xlu0 %v495, 100
        %v1821 = vpop.permute.xlu0 %1820
        %1822 = vrot.lane.b32.xlu0 %v576, 100
        %v1823 = vpop.permute.xlu0 %1822
        %v1824 = vsel %vm660, %v1821, 0
        %v1826 = vsel %vm660, %v1823, 0
        %1828 = vmatprep.subr.mxu0 0.0
        %1829 = vmatpush1.xpose.msra.mxu0 0.0
        %1830 = vmatprep.subr.mxu0 0.0
        %1831 = vmatpush1.xpose.msra.mxu0 0.0
        %1832 = vmatprep.subr.mxu0 0.0
        %1833 = vmatpush1.xpose.msra.mxu0 0.0
        %1834 = vmatprep.subr.mxu0 0.0
        %1835 = vmatpush1.xpose.msra.mxu0 0.0
        %1836 = vmatprep.subr.mxu0 0.0
        %1837 = vmatpush1.xpose.msra.mxu0 0.0
        %1838 = vmatprep.subr.mxu0 0.0
        %1839 = vmatpush1.xpose.msra.mxu0 0.0
        %1840 = vmatprep.subr.mxu0 0.0
        %1841 = vmatpush1.xpose.msra.mxu0 0.0
        %1842 = vmatprep.subr.mxu0 0.0
        %1843 = vmatpush1.xpose.msra.mxu0 0.0
        %1844 = vmatprep.subr.mxu0 0.0
        %1845 = vmatpush1.xpose.msra.mxu0 0.0
        %1846 = vmatprep.subr.mxu0 0.0
        %1847 = vmatpush1.xpose.msra.mxu0 0.0
        %1848 = vmatprep.subr.mxu0 0.0
        %1849 = vmatpush1.xpose.msra.mxu0 0.0
        %1850 = vmatprep.subr.mxu0 0.0
        %1851 = vmatpush1.xpose.msra.mxu0 0.0
        %1852 = vmatprep.subr.mxu0 0.0
        %1853 = vmatpush1.xpose.msra.mxu0 0.0
        %1854 = vmatprep.subr.mxu0 0.0
        %1855 = vmatpush1.xpose.msra.mxu0 0.0
        %1856 = vmatprep.subr.mxu0 0.0
        %1857 = vmatpush1.xpose.msra.mxu0 0.0
        %1858 = vmatprep.subr.mxu0 0.0
        %1859 = vmatpush1.xpose.msra.mxu0 %v1826
        %1860 = vmatprep.subr.mxu0 0.0
        %1861 = vmatpush2.xpose.msra.mxu0 0.0
        %1862 = vmatprep.subr.mxu0 0.0
        %1863 = vmatpush2.xpose.msra.mxu0 0.0
        %1864 = vmatprep.subr.mxu0 0.0
        %1865 = vmatpush2.xpose.msra.mxu0 0.0
        %1866 = vmatprep.subr.mxu0 0.0
        %1867 = vmatpush2.xpose.msra.mxu0 0.0
        %1868 = vmatprep.subr.mxu0 0.0
        %1869 = vmatpush2.xpose.msra.mxu0 0.0
        %1870 = vmatprep.subr.mxu0 0.0
        %1871 = vmatpush2.xpose.msra.mxu0 0.0
        %1872 = vmatprep.subr.mxu0 0.0
        %1873 = vmatpush2.xpose.msra.mxu0 0.0
        %1874 = vmatprep.subr.mxu0 0.0
        %1875 = vmatpush2.xpose.msra.mxu0 0.0
        %1876 = vmatprep.subr.mxu0 0.0
        %1877 = vmatpush2.xpose.msra.mxu0 0.0
        %1878 = vmatprep.subr.mxu0 0.0
        %1879 = vmatpush2.xpose.msra.mxu0 0.0
        %1880 = vmatprep.subr.mxu0 0.0
        %1881 = vmatpush2.xpose.msra.mxu0 0.0
        %1882 = vmatprep.subr.mxu0 0.0
        %1883 = vmatpush2.xpose.msra.mxu0 0.0
        %1884 = vmatprep.subr.mxu0 0.0
        %1885 = vmatpush2.xpose.msra.mxu0 0.0
        %1886 = vmatprep.subr.mxu0 0.0
        %1887 = vmatpush2.xpose.msra.mxu0 0.0
        %1888 = vmatprep.subr.mxu0 0.0
        %1889 = vmatpush2.xpose.msra.mxu0 0.0
        %1890 = vmatprep.subr.mxu0 0.0
        %1891 = vmatpush2.xpose.msra.mxu0 0.0
        %1892 = vmatprep.mubr.f32.mxu0 0.0
        %1893 = vmatmul.mubr.f32.gmra.mxu0 %v1824
        %v1894 = vpop.f32.mrf.mxu0
        %v1895 = vadd.f32 0.0, %v1894
        %v1896 = vpop.f32.mrf.mxu0
        %1897 = vdwg.mxu0
        %v1898 = vmul.f32 %v1895, 0.5
        %v1899 = vsel %vm738, %v1898, -inf
        %1900 = vmax.xlane.f32.xlu0 %v1899
        %v1901 = vpop.xlane.xlu0 %1900
        %v1902 = vsub.f32 %v1898, %v1901
        %v1903 = vmul.f32 %v1902, 1.442695
        %v1904 = vpow.pop %v1903
        %v1905 = vsel %vm738, %v1904, 0.0
        %1906 = vadd.xlane.f32.xlu0 %v1905
        %v1907 = vpop.xlane.xlu0 %1906
        %v1908 = vrcp.pop %v1907
        %v1909 = vmul.f32 %v1904, %v1908
        %1910 = vrot.lane.b32.xlu0 %v657, 100
        %v1911 = vpop.permute.xlu0 %1910
        %v1914 = vsel %vm738, %v1909, 0
        %1916 = vmatprep.subr.mxu0 0.0
        %1917 = vmatpush1.msra.mxu0 0.0
        %1918 = vmatprep.subr.mxu0 0.0
        %1919 = vmatpush1.msra.mxu0 0.0
        %1920 = vmatprep.subr.mxu0 0.0
        %1921 = vmatpush1.msra.mxu0 0.0
        %1922 = vmatprep.subr.mxu0 0.0
        %1923 = vmatpush1.msra.mxu0 0.0
        %1924 = vmatprep.subr.mxu0 0.0
        %1925 = vmatpush1.msra.mxu0 0.0
        %1926 = vmatprep.subr.mxu0 0.0
        %1927 = vmatpush1.msra.mxu0 0.0
        %1928 = vmatprep.subr.mxu0 0.0
        %1929 = vmatpush1.msra.mxu0 0.0
        %1930 = vmatprep.subr.mxu0 0.0
        %1931 = vmatpush1.msra.mxu0 0.0
        %1932 = vmatprep.subr.mxu0 0.0
        %1933 = vmatpush1.msra.mxu0 0.0
        %1934 = vmatprep.subr.mxu0 0.0
        %1935 = vmatpush1.msra.mxu0 0.0
        %1936 = vmatprep.subr.mxu0 0.0
        %1937 = vmatpush1.msra.mxu0 0.0
        %1938 = vmatprep.subr.mxu0 0.0
        %1939 = vmatpush1.msra.mxu0 0.0
        %1940 = vmatprep.subr.mxu0 0.0
        %1941 = vmatpush1.msra.mxu0 0.0
        %1942 = vmatprep.subr.mxu0 0.0
        %1943 = vmatpush1.msra.mxu0 0.0
        %1944 = vmatprep.subr.mxu0 0.0
        %1945 = vmatpush1.msra.mxu0 0.0
        %1946 = vmatprep.subr.mxu0 0.0
        %1947 = vmatpush1.msra.mxu0 %v1911
        %1948 = vmatprep.subr.mxu0 0.0
        %1949 = vmatpush2.msra.mxu0 0.0
        %1950 = vmatprep.subr.mxu0 0.0
        %1951 = vmatpush2.msra.mxu0 0.0
        %1952 = vmatprep.subr.mxu0 0.0
        %1953 = vmatpush2.msra.mxu0 0.0
        %1954 = vmatprep.subr.mxu0 0.0
        %1955 = vmatpush2.msra.mxu0 0.0
        %1956 = vmatprep.subr.mxu0 0.0
        %1957 = vmatpush2.msra.mxu0 0.0
        %1958 = vmatprep.subr.mxu0 0.0
        %1959 = vmatpush2.msra.mxu0 0.0
        %1960 = vmatprep.subr.mxu0 0.0
        %1961 = vmatpush2.msra.mxu0 0.0
        %1962 = vmatprep.subr.mxu0 0.0
        %1963 = vmatpush2.msra.mxu0 0.0
        %1964 = vmatprep.subr.mxu0 0.0
        %1965 = vmatpush2.msra.mxu0 0.0
        %1966 = vmatprep.subr.mxu0 0.0
        %1967 = vmatpush2.msra.mxu0 0.0
        %1968 = vmatprep.subr.mxu0 0.0
        %1969 = vmatpush2.msra.mxu0 0.0
        %1970 = vmatprep.subr.mxu0 0.0
        %1971 = vmatpush2.msra.mxu0 0.0
        %1972 = vmatprep.subr.mxu0 0.0
        %1973 = vmatpush2.msra.mxu0 0.0
        %1974 = vmatprep.subr.mxu0 0.0
        %1975 = vmatpush2.msra.mxu0 0.0
        %1976 = vmatprep.subr.mxu0 0.0
        %1977 = vmatpush2.msra.mxu0 0.0
        %1978 = vmatprep.subr.mxu0 0.0
        %1979 = vmatpush2.msra.mxu0 0.0
        %1980 = vmatprep.mubr.f32.mxu0 0.0
        %1981 = vmatmul.mubr.f32.gmra.mxu0 %v1914
        %v1982 = vpop.f32.mrf.mxu0
        %v1983 = vadd.f32 0.0, %v1982
        %v1984 = vpop.f32.mrf.mxu0
        %1985 = vdwg.mxu0
        %1987 = vrot.lane.b32.xlu0 %v987, 4
        %v1988 = vpop.permute.xlu0 %1987
        %1991 = vrot.lane.b32.xlu0 %v1153, 8
        %v1992 = vpop.permute.xlu0 %1991
        %1995 = vrot.lane.b32.xlu0 %v1319, 12
        %v1996 = vpop.permute.xlu0 %1995
        %1999 = vrot.lane.b32.xlu0 %v1485, 16
        %v2000 = vpop.permute.xlu0 %1999
        %2003 = vrot.lane.b32.xlu0 %v1651, 20
        %v2004 = vpop.permute.xlu0 %2003
        %2007 = vrot.lane.b32.xlu0 %v1817, 24
        %v2008 = vpop.permute.xlu0 %2007
        %2011 = vrot.lane.b32.xlu0 %v1983, 28
        %v2012 = vpop.permute.xlu0 %2011
        %v2014 = vsel %vm660, %v820, %v1988
        %v2015 = vsel %vm738, %v2014, %v1992
        %vm2016 = vcmask 97280
        %v2017 = vsel %vm2016, %v2015, %v1996
        %vm2018 = vcmask 130048
        %v2019 = vsel %vm2018, %v2017, %v2000
        %vm2020 = vcmask 162816
        %v2021 = vsel %vm2020, %v2019, %v2004
        %vm2022 = vcmask 195584
        %v2023 = vsel %vm2022, %v2021, %v2008
        %vm2024 = vcmask 228352
        %v2025 = vsel %vm2024, %v2023, %v2012
        %v2026 = vld [vmem:[%s9] sm:$0xff]
        %v2027 = vld [vmem:[%s9 + $0x8] sm:$0xff]
        %v2028 = vld [vmem:[%s9 + $0x10] sm:$0xff]
        %v2029 = vld [vmem:[%s9 + $0x18] sm:$0xff]
        %v2030 = vld [vmem:[%s10] sm:$0x1]
        %v2032 = vlaneseq
        %v2033 = vshrl.u32 %v2032, 7
        %v2034 = vsub.s32 0, %v2033
        %v2035 = vrot.slane %v2030, %v2034
        %v2038 = vsel %vm383, %v2025, 0
        %2040 = vmatprep.subr.mxu0 0.0
        %2041 = vmatpush1.msra.mxu0 0.0
        %2042 = vmatprep.subr.mxu0 0.0
        %2043 = vmatpush1.msra.mxu0 0.0
        %2044 = vmatprep.subr.mxu0 0.0
        %2045 = vmatpush1.msra.mxu0 0.0
        %2046 = vmatprep.subr.mxu0 0.0
        %2047 = vmatpush1.msra.mxu0 0.0
        %2048 = vmatprep.subr.mxu0 0.0
        %2049 = vmatpush1.msra.mxu0 0.0
        %2050 = vmatprep.subr.mxu0 0.0
        %2051 = vmatpush1.msra.mxu0 0.0
        %2052 = vmatprep.subr.mxu0 0.0
        %2053 = vmatpush1.msra.mxu0 0.0
        %2054 = vmatprep.subr.mxu0 0.0
        %2055 = vmatpush1.msra.mxu0 0.0
        %2056 = vmatprep.subr.mxu0 0.0
        %2057 = vmatpush1.msra.mxu0 0.0
        %2058 = vmatprep.subr.mxu0 0.0
        %2059 = vmatpush1.msra.mxu0 0.0
        %2060 = vmatprep.subr.mxu0 0.0
        %2061 = vmatpush1.msra.mxu0 0.0
        %2062 = vmatprep.subr.mxu0 0.0
        %2063 = vmatpush1.msra.mxu0 0.0
        %2064 = vmatprep.subr.mxu0 0.0
        %2065 = vmatpush1.msra.mxu0 %v2029
        %2066 = vmatprep.subr.mxu0 0.0
        %2067 = vmatpush1.msra.mxu0 %v2028
        %2068 = vmatprep.subr.mxu0 0.0
        %2069 = vmatpush1.msra.mxu0 %v2027
        %2070 = vmatprep.subr.mxu0 0.0
        %2071 = vmatpush1.msra.mxu0 %v2026
        %2072 = vmatprep.subr.mxu0 0.0
        %2073 = vmatpush2.msra.mxu0 0.0
        %2074 = vmatprep.subr.mxu0 0.0
        %2075 = vmatpush2.msra.mxu0 0.0
        %2076 = vmatprep.subr.mxu0 0.0
        %2077 = vmatpush2.msra.mxu0 0.0
        %2078 = vmatprep.subr.mxu0 0.0
        %2079 = vmatpush2.msra.mxu0 0.0
        %2080 = vmatprep.subr.mxu0 0.0
        %2081 = vmatpush2.msra.mxu0 0.0
        %2082 = vmatprep.subr.mxu0 0.0
        %2083 = vmatpush2.msra.mxu0 0.0
        %2084 = vmatprep.subr.mxu0 0.0
        %2085 = vmatpush2.msra.mxu0 0.0
        %2086 = vmatprep.subr.mxu0 0.0
        %2087 = vmatpush2.msra.mxu0 0.0
        %2088 = vmatprep.subr.mxu0 0.0
        %2089 = vmatpush2.msra.mxu0 0.0
        %2090 = vmatprep.subr.mxu0 0.0
        %2091 = vmatpush2.msra.mxu0 0.0
        %2092 = vmatprep.subr.mxu0 0.0
        %2093 = vmatpush2.msra.mxu0 0.0
        %2094 = vmatprep.subr.mxu0 0.0
        %2095 = vmatpush2.msra.mxu0 0.0
        %2096 = vmatprep.subr.mxu0 0.0
        %2097 = vmatpush2.msra.mxu0 0.0
        %2098 = vmatprep.subr.mxu0 0.0
        %2099 = vmatpush2.msra.mxu0 0.0
        %2100 = vmatprep.subr.mxu0 0.0
        %2101 = vmatpush2.msra.mxu0 0.0
        %2102 = vmatprep.subr.mxu0 0.0
        %2103 = vmatpush2.msra.mxu0 0.0
        %2104 = vmatprep.mubr.f32.mxu0 0.0
        %2105 = vmatmul.mubr.f32.gmra.mxu0 %v2038
        %v2106 = vpop.f32.mrf.mxu0
        %v2107 = vadd.f32 %v2035, %v2106
        %v2108 = vpop.f32.mrf.mxu0
        %2109 = vdwg.mxu0
        %v2110 = vadd.f32 %v382, %v2107
        %2111 = vst.msk [vmem:[%s377] sm:$0xff] %vm383, %v2110
        %s2112 = sand.u32 %s269, 1
        %s2113 = scalar_lea.sflag [#allocation3], %s2112
        %s2114 = sand.u32 %s269, 1
        %s2115 = smul.addr %s2114, 8
        %s2116 = scalar_lea.vmem [#allocation2], %s2115
        // Predicated region
        $region65: #{multihead_attention_with_prenorm.1} parent=63 // pred_check
          %p2117 = pneg %p279
        $region66: #{multihead_attention_with_prenorm.1} parent=63 // pred_check_branch
          %2119 = sbr.rel (%p2117) target = $region68
        $region67: #{multihead_attention_with_prenorm.1} parent=63 // pred_region
          %s2121 = ssub.s32 128, 128
          %2122 = vsyncadd %s2113, %s2121
          %s2123 = smul.addr %s25, 128
          %s2124 = scalar_lea.hbm %s11, %s2123
          %s2126 = sshll.u32 %s2116, 4
          %s2127 = int_to_ptr.vmem [resolvable:$true] %s2126
          %2129 = dma.vmem_to_hbm [thread:$0]  %s2127, 128, %s2124, %s2113
        $region68: #{multihead_attention_with_prenorm.1} parent=63 // pred_fallthru
          _
      $region64: #{multihead_attention_with_prenorm.1} parent=5 // pred_fallthru
        _
      %p2130 = scmp.le.s32.totalorder 2, %s20
      // Predicated region
      $region69: #{multihead_attention_with_prenorm.1} parent=5 // pred_check
        %p2131 = pneg %p2130
      $region70: #{multihead_attention_with_prenorm.1} parent=5 // pred_check_branch
        %2133 = sbr.rel (%p2131) target = $region72
      $region71: #{multihead_attention_with_prenorm.1} parent=5 // pred_region
        %s2134 = ssub.s32 %s20, 2
        // Predicated region
        $region73: #{multihead_attention_with_prenorm.1} parent=71 // pred_check
          %p2135 = pneg %p285
        $region74: #{multihead_attention_with_prenorm.1} parent=71 // pred_check_branch
          %2137 = sbr.rel (%p2135) target = $region76
        $region75: #{multihead_attention_with_prenorm.1} parent=71 // pred_region
          %s2138 = sand.u32 %s270, 1
          %s2139 = scalar_lea.sflag [#allocation3], %s2138
          %s2140 = sand.u32 %s270, 1
          %s2141 = smul.addr %s2140, 8
          %s2142 = scalar_lea.vmem [#allocation2], %s2141
          %2143 = dma.done %s2139, 128
        $region76: #{multihead_attention_with_prenorm.1} parent=71 // pred_fallthru
          _
      $region72: #{multihead_attention_with_prenorm.1} parent=5 // pred_fallthru
        _
    $region6: #{multihead_attention_with_prenorm.1} parent=1 // loop_footer
      %s24 = sadd.s32 1, %s20
    $region7: #{multihead_attention_with_prenorm.1} parent=1 // loop_footer_branch
      %19 = sbr.rel target = $region3
    $region8: #{multihead_attention_with_prenorm.1} parent=1 // loop_exit
      _
    %2144 = vsyncpa [#allocation3], 1
    %s2145 = scalar_lea.sflag [#allocation3], 1
    %2146 = vsyncpa %s2145, 1

</llo_original>
